<compile_context>
chip_gen: v6e
topology: v6e:2x2x1
jax: 0.10.0
libtpu: 0.0.40
codegen_flags: <defaults>
</compile_context>

<pallas_src>
import jax
import jax.numpy as jnp
from jax.experimental import pallas as pl
from jax.experimental.pallas import tpu as pltpu


def _round_up(x, m):
    return (x + m - 1) // m * m


def _linkpred_kernel(xi_ref, xj_ref,
                     w1_ref, b1_ref,
                     w2_ref, b2_ref,
                     w3_ref, b3_ref,
                     o_ref):
    # Batch-major tiles: xi/xj are [TN, IN_C]; all VPU/EUP math in f32.
    x = xi_ref[...].astype(jnp.float32) * xj_ref[...].astype(jnp.float32)

    # Layer 1: [TN, IN_C] @ [IN_C, HID] -> [TN, HID]
    h1 = jnp.dot(x, w1_ref[...], preferred_element_type=jnp.float32) + b1_ref[...]
    h1 = jnp.maximum(h1, 0.0)

    # Layer 2: [TN, HID] @ [HID, HID] -> [TN, HID]
    h2 = jnp.dot(h1, w2_ref[...], preferred_element_type=jnp.float32) + b2_ref[...]
    h2 = jnp.maximum(h2, 0.0)

    # Layer 3: [TN, HID] @ [HID, OUT_C] -> [TN, OUT_C]
    logits = jnp.dot(h2, w3_ref[...], preferred_element_type=jnp.float32) + b3_ref[...]
    o_ref[...] = jax.nn.sigmoid(logits)


def link_predictor(x_i, x_j, params, *, tile_n=4096):
    """Eval-mode LinkPredictor forward.

    params = (w1, b1, w2, b2, w3, b3) in PyTorch nn.Linear layout:
      w: [out_features, in_features], b: [out_features].
    x_i, x_j: [N, in_channels].  Returns [N, out_channels] link probabilities.
    """
    w1, b1, w2, b2, w3, b3 = params
    n, in_c = x_i.shape
    hid_c = w1.shape[0]
    out_c = w3.shape[0]

    # Batch tile (multiple of 128 sublanes).  Non-divisible N handled by Pallas
    # boundary masking -> no host-side padding copies.
    tn = max(128, min(_round_up(tile_n, 128), _round_up(n, 128)))
    grid = (pl.cdiv(n, tn),)

    # One-time tiny weight layout plumbing ([out,in] -> [in,out]); biases as rows.
    w1t = w1.T.astype(jnp.float32)                 # [in_c, hid_c]
    w2t = w2.T.astype(jnp.float32)                 # [hid_c, hid_c]
    w3t = w3.T.astype(jnp.float32)                 # [hid_c, out_c]
    b1r = b1.reshape(1, hid_c).astype(jnp.float32)
    b2r = b2.reshape(1, hid_c).astype(jnp.float32)
    b3r = b3.reshape(1, out_c).astype(jnp.float32)

    x_spec = pl.BlockSpec((tn, in_c), lambda i: (i, 0))
    const = lambda i: (0, 0)   # weights/biases resident in VMEM across grid steps

    in_bytes = int(x_i.dtype.itemsize)
    flops = 2 * n * (in_c * hid_c + hid_c * hid_c + hid_c * out_c) + n * (in_c + 2 * hid_c)
    bytes_accessed = (n * 2 * in_c * in_bytes + n * out_c * 4
                      + 4 * (w1t.size + w2t.size + w3t.size + 2 * hid_c + out_c))
    cost = pl.CostEstimate(flops=flops,
                           transcendentals=n * out_c,
                           bytes_accessed=bytes_accessed)

    out = pl.pallas_call(
        _linkpred_kernel,
        out_shape=jax.ShapeDtypeStruct((n, out_c), jnp.float32),
        grid=grid,
        in_specs=[
            x_spec,                               # x_i  [n, in_c]
            x_spec,                               # x_j  [n, in_c]
            pl.BlockSpec((in_c, hid_c), const),   # W1^T
            pl.BlockSpec((1, hid_c), const),      # b1
            pl.BlockSpec((hid_c, hid_c), const),  # W2^T
            pl.BlockSpec((1, hid_c), const),      # b2
            pl.BlockSpec((hid_c, out_c), const),  # W3^T
            pl.BlockSpec((1, out_c), const),      # b3
        ],
        out_specs=pl.BlockSpec((tn, out_c), lambda i: (i, 0)),
        compiler_params=pltpu.CompilerParams(
            dimension_semantics=("parallel",),     # v7x: shard batch over 2 TCs
            vmem_limit_bytes=32 * 1024 * 1024,     # safe on v5e/v6e/v7x
        ),
        cost_estimate=cost,
    )(x_i, x_j, w1t, b1r, w2t, b2r, w3t, b3r)

    return out


def _ref_forward(x_i, x_j, params):
    """Pure-JAX f32 reference (same math as the PyTorch module in eval mode)."""
    w1, b1, w2, b2, w3, b3 = params
    x = x_i * x_j
    x = jnp.maximum(x @ w1.T + b1, 0.0)
    x = jnp.maximum(x @ w2.T + b2, 0.0)
    x = x @ w3.T + b3
    return jax.nn.sigmoid(x)


def _init_params(key, in_channels, hidden_channels, out_channels):
    """Deterministic init mimicking nn.Linear default (uniform +/- 1/sqrt(fan_in)).

    Weights kept in native PyTorch layout [out_features, in_features]."""
    ks = jax.random.split(key, 6)

    def lin(kw, kb, fan_in, fan_out):
        bound = 1.0 / float(fan_in) ** 0.5
        w = jax.random.uniform(kw, (fan_out, fan_in), jnp.float32, -bound, bound)
        b = jax.random.uniform(kb, (fan_out,), jnp.float32, -bound, bound)
        return w, b

    w1, b1 = lin(ks[0], ks[1], in_channels, hidden_channels)
    w2, b2 = lin(ks[2], ks[3], hidden_channels, hidden_channels)
    w3, b3 = lin(ks[4], ks[5], hidden_channels, out_channels)
    return (w1, b1, w2, b2, w3, b3)


if __name__ == "__main__":
    # Small shapes consistent with the module: num_layers=3, eval-mode dropout.
    N = 1000           # number of candidate links (exercises partial last block)
    IN_C = 32          # in_channels
    HID_C = 64         # hidden_channels
    OUT_C = 1          # out_channels (link probability)

    key = jax.random.PRNGKey(0)
    k_xi, k_xj, k_params = jax.random.split(key, 3)

    x_i = jax.random.normal(k_xi, (N, IN_C), jnp.float32)
    x_j = jax.random.normal(k_xj, (N, IN_C), jnp.float32)
    params = _init_params(k_params, IN_C, HID_C, OUT_C)

    # Small batch tile so the demo runs multiple grid steps (incl. a partial one);
    # production would use the default 4096.
    out = link_predictor(x_i, x_j, params, tile_n=256)
    out = jax.block_until_ready(out)

    ref = jax.block_until_ready(_ref_forward(x_i, x_j, params))
    assert out.shape == (N, OUT_C)
    assert jnp.allclose(out, ref, atol=1e-2, rtol=1e-2), "mismatch vs reference"

    print("KERNEL_OK")
</pallas_src>

<mosaic_0001>
module attributes {stable_mosaic.version = 11 : i64} {
  func.func @_linkpred_kernel(%arg0: i32, %arg1: memref<256x32xf32, #tpu.memory_space<vmem>>, %arg2: memref<256x32xf32, #tpu.memory_space<vmem>>, %arg3: memref<32x64xf32, #tpu.memory_space<vmem>>, %arg4: memref<1x64xf32, #tpu.memory_space<vmem>>, %arg5: memref<64x64xf32, #tpu.memory_space<vmem>>, %arg6: memref<1x64xf32, #tpu.memory_space<vmem>>, %arg7: memref<64x1xf32, #tpu.memory_space<vmem>>, %arg8: memref<1x1xf32, #tpu.memory_space<vmem>>, %arg9: memref<256x1xf32, #tpu.memory_space<vmem>>) attributes {dimension_semantics = [#tpu.dimension_semantics<parallel>], iteration_bounds = array<i64: 4>, scalar_prefetch = 0 : i64, scratch_operands = 0 : i64, tpu.core_type = #tpu.core_type<tc>, window_params = [{transform_indices = @transform_0, window_bounds = array<i64: 256, 32>}, {transform_indices = @transform_1, window_bounds = array<i64: 256, 32>}, {pipeline_mode = #tpu.pipeline_mode<synchronous>, transform_indices = @transform_2, window_bounds = array<i64: 32, 64>}, {pipeline_mode = #tpu.pipeline_mode<synchronous>, transform_indices = @transform_3, window_bounds = array<i64: 1, 64>}, {pipeline_mode = #tpu.pipeline_mode<synchronous>, transform_indices = @transform_4, window_bounds = array<i64: 64, 64>}, {pipeline_mode = #tpu.pipeline_mode<synchronous>, transform_indices = @transform_5, window_bounds = array<i64: 1, 64>}, {pipeline_mode = #tpu.pipeline_mode<synchronous>, transform_indices = @transform_6, window_bounds = array<i64: 64, 1>}, {pipeline_mode = #tpu.pipeline_mode<synchronous>, transform_indices = @transform_7, window_bounds = array<i64: 1, 1>}, {transform_indices = @transform_8, window_bounds = array<i64: 256, 1>}]} {
    %c0 = arith.constant 0 : index
    %c0_0 = arith.constant 0 : index
    %0 = vector.load %arg1[%c0, %c0_0] : memref<256x32xf32, #tpu.memory_space<vmem>>, vector<256x32xf32>
    %c0_1 = arith.constant 0 : index
    %c0_2 = arith.constant 0 : index
    %1 = vector.load %arg2[%c0_1, %c0_2] : memref<256x32xf32, #tpu.memory_space<vmem>>, vector<256x32xf32>
    %2 = arith.mulf %0, %1 : vector<256x32xf32>
    %c0_3 = arith.constant 0 : index
    %c0_4 = arith.constant 0 : index
    %3 = vector.load %arg3[%c0_3, %c0_4] : memref<32x64xf32, #tpu.memory_space<vmem>>, vector<32x64xf32>
    %cst = arith.constant dense<0.000000e+00> : vector<256x64xf32>
    %4 = tpu.matmul %2, %3, %cst {dimension_numbers = #tpu.dot_dimension_numbers<[1], [0], [0], [1], [0, 0, 1, 1], [], []>} : vector<256x32xf32>, vector<32x64xf32>, vector<256x64xf32> -> vector<256x64xf32>
    %c0_5 = arith.constant 0 : index
    %c0_6 = arith.constant 0 : index
    %5 = vector.load %arg4[%c0_5, %c0_6] : memref<1x64xf32, #tpu.memory_space<vmem>>, vector<1x64xf32>
    %6 = vector.broadcast %5 : vector<1x64xf32> to vector<256x64xf32>
    %7 = arith.addf %4, %6 : vector<256x64xf32>
    %cst_7 = arith.constant 0.000000e+00 : f32
    %8 = vector.broadcast %cst_7 : f32 to vector<256x64xf32>
    %9 = arith.maximumf %7, %8 : vector<256x64xf32>
    %c0_8 = arith.constant 0 : index
    %c0_9 = arith.constant 0 : index
    %10 = vector.load %arg5[%c0_8, %c0_9] : memref<64x64xf32, #tpu.memory_space<vmem>>, vector<64x64xf32>
    %cst_10 = arith.constant dense<0.000000e+00> : vector<256x64xf32>
    %11 = tpu.matmul %9, %10, %cst_10 {dimension_numbers = #tpu.dot_dimension_numbers<[1], [0], [0], [1], [0, 0, 1, 1], [], []>} : vector<256x64xf32>, vector<64x64xf32>, vector<256x64xf32> -> vector<256x64xf32>
    %c0_11 = arith.constant 0 : index
    %c0_12 = arith.constant 0 : index
    %12 = vector.load %arg6[%c0_11, %c0_12] : memref<1x64xf32, #tpu.memory_space<vmem>>, vector<1x64xf32>
    %13 = vector.broadcast %12 : vector<1x64xf32> to vector<256x64xf32>
    %14 = arith.addf %11, %13 : vector<256x64xf32>
    %cst_13 = arith.constant 0.000000e+00 : f32
    %15 = vector.broadcast %cst_13 : f32 to vector<256x64xf32>
    %16 = arith.maximumf %14, %15 : vector<256x64xf32>
    %c0_14 = arith.constant 0 : index
    %c0_15 = arith.constant 0 : index
    %17 = vector.load %arg7[%c0_14, %c0_15] : memref<64x1xf32, #tpu.memory_space<vmem>>, vector<64x1xf32>
    %cst_16 = arith.constant dense<0.000000e+00> : vector<256x1xf32>
    %18 = tpu.matmul %16, %17, %cst_16 {dimension_numbers = #tpu.dot_dimension_numbers<[1], [0], [0], [1], [0, 0, 1, 1], [], []>} : vector<256x64xf32>, vector<64x1xf32>, vector<256x1xf32> -> vector<256x1xf32>
    %c0_17 = arith.constant 0 : index
    %c0_18 = arith.constant 0 : index
    %19 = vector.load %arg8[%c0_17, %c0_18] : memref<1x1xf32, #tpu.memory_space<vmem>>, vector<1x1xf32>
    %20 = vector.broadcast %19 : vector<1x1xf32> to vector<256x1xf32>
    %21 = arith.addf %18, %20 : vector<256x1xf32>
    %22 = arith.negf %21 : vector<256x1xf32>
    %23 = math.exp %22 : vector<256x1xf32>
    %cst_19 = arith.constant 1.000000e+00 : f32
    %24 = vector.broadcast %cst_19 : f32 to vector<256x1xf32>
    %25 = arith.addf %24, %23 : vector<256x1xf32>
    %26 = arith.divf %24, %25 : vector<256x1xf32>
    %c0_20 = arith.constant 0 : index
    %c0_21 = arith.constant 0 : index
    %27 = vector.load %arg9[%c0_20, %c0_21] : memref<256x1xf32, #tpu.memory_space<vmem>>, vector<256x1xf32>
    tpu.vector_store %arg9[%c0_20, %c0_21], %26 {strides = array<i32>} : memref<256x1xf32, #tpu.memory_space<vmem>>, vector<256x1xf32>,
    return
  }
  func.func @transform_0(%arg0: i32) -> (i32, i32) {
    %c0_i32 = arith.constant 0 : i32
    %c0_i32_0 = arith.constant 0 : i32
    return %arg0, %c0_i32 : i32, i32
  }
  func.func @transform_1(%arg0: i32) -> (i32, i32) {
    %c0_i32 = arith.constant 0 : i32
    %c0_i32_0 = arith.constant 0 : i32
    return %arg0, %c0_i32 : i32, i32
  }
  func.func @transform_2(%arg0: i32) -> (i32, i32) {
    %c0_i32 = arith.constant 0 : i32
    %c0_i32_0 = arith.constant 0 : i32
    %c0_i32_1 = arith.constant 0 : i32
    return %c0_i32, %c0_i32_0 : i32, i32
  }
  func.func @transform_3(%arg0: i32) -> (i32, i32) {
    %c0_i32 = arith.constant 0 : i32
    %c0_i32_0 = arith.constant 0 : i32
    %c0_i32_1 = arith.constant 0 : i32
    return %c0_i32, %c0_i32_0 : i32, i32
  }
  func.func @transform_4(%arg0: i32) -> (i32, i32) {
    %c0_i32 = arith.constant 0 : i32
    %c0_i32_0 = arith.constant 0 : i32
    %c0_i32_1 = arith.constant 0 : i32
    return %c0_i32, %c0_i32_0 : i32, i32
  }
  func.func @transform_5(%arg0: i32) -> (i32, i32) {
    %c0_i32 = arith.constant 0 : i32
    %c0_i32_0 = arith.constant 0 : i32
    %c0_i32_1 = arith.constant 0 : i32
    return %c0_i32, %c0_i32_0 : i32, i32
  }
  func.func @transform_6(%arg0: i32) -> (i32, i32) {
    %c0_i32 = arith.constant 0 : i32
    %c0_i32_0 = arith.constant 0 : i32
    %c0_i32_1 = arith.constant 0 : i32
    return %c0_i32, %c0_i32_0 : i32, i32
  }
  func.func @transform_7(%arg0: i32) -> (i32, i32) {
    %c0_i32 = arith.constant 0 : i32
    %c0_i32_0 = arith.constant 0 : i32
    %c0_i32_1 = arith.constant 0 : i32
    return %c0_i32, %c0_i32_0 : i32, i32
  }
  func.func @transform_8(%arg0: i32) -> (i32, i32) {
    %c0_i32 = arith.constant 0 : i32
    %c0_i32_0 = arith.constant 0 : i32
    return %arg0, %c0_i32 : i32, i32
  }
}

</mosaic_0001>

<llo_original>
// kernel: tpu_custom_call.1
$region0: #{tpu_custom_call.1}
  #allocation0 [shape = 'u32[]', space=smem, size = 0x4, offset = 0x4, fixed_abs, tag = 'smem constant byte address 0x4 - core index']
  #allocation1 [shape = 'u32[144,128]{1,0:T(1,128)}', space=vmem, size = 0x12000, scoped, tag = 'internal scratch']
  #allocation2 [shape = 'f32[1,1]{1,0:T(1,128)S(1)}', space=vmem, size = 0x200, scoped, tag = 'scoped memory for tpu_custom_call.1']
  %s0 = inlined_call_operand.vmem [shape: f32[1000,32], index: 0, kind: input, shape index: {}]
  %s1 = inlined_call_operand.vmem [shape: f32[1000,32], index: 1, kind: input, shape index: {}]
  %s2 = inlined_call_operand.vmem [shape: f32[32,64], index: 2, kind: input, shape index: {}]
  %s3 = inlined_call_operand.vmem [shape: f32[1,64], index: 3, kind: input, shape index: {}]
  %s4 = inlined_call_operand.vmem [shape: f32[64,64], index: 4, kind: input, shape index: {}]
  %s5 = inlined_call_operand.vmem [shape: f32[1,64], index: 5, kind: input, shape index: {}]
  %s6 = inlined_call_operand.vmem [shape: f32[64,1], index: 6, kind: input, shape index: {}]
  %s7 = inlined_call_operand.<no memory space> [shape: f32[1,1], index: 7, kind: input, shape index: {}]
  %s8 = inlined_call_operand.vmem [shape: f32[1000,1], index: 8, kind: output, shape index: {}]
  %s9 = sld [smem:[#allocation0]]
  $region113: #{tpu_custom_call.1} parent=0
    _
  %s11 = ssub.s32 1, %s9
  %s12 = scalar_select 0, %s11, %s9
  %v13 = vstv %s7
  %14 = vst [vmem:[#allocation2] sm:$0x1] %v13
  $region1: #{tpu_custom_call.1} parent=0
    #allocation3 [shape = 'u8[262144]{0}', space=vmem, size = 0x40000, scoped, tag = 'output window, operand 0']
    loop: start=0, step=1, limit=6
    $region2: #{tpu_custom_call.1} parent=1 // loop_pre_header
      _
    $region3: #{tpu_custom_call.1} parent=1 // loop_header
      %s16 = sphi 0, %s20
      %p17 = scmp.ge.s32.totalorder %s16, 6
      %s26 = sphi 0, %s28
      %s29 = sphi 0, %s26
      %s30 = sphi 0, %s29
      %s46 = sphi 0, %s30
      %s52 = sphi 0, %s54
      %s55 = sphi 0, %s52
      %s56 = sphi 0, %s55
      %s72 = sphi 0, %s56
      %s76 = sphi 0, %s76
      %s78 = sphi 0, %s76
      %s79 = sphi 0, %s78
      %s93 = sphi 0, %s79
      %s97 = sphi 0, %s97
      %s99 = sphi 0, %s97
      %s100 = sphi 0, %s99
      %s114 = sphi 0, %s100
      %s118 = sphi 0, %s118
      %s120 = sphi 0, %s118
      %s121 = sphi 0, %s120
      %s135 = sphi 0, %s121
      %s139 = sphi 0, %s139
      %s141 = sphi 0, %s139
      %s142 = sphi 0, %s141
      %s156 = sphi 0, %s142
      %s160 = sphi 0, %s160
      %s162 = sphi 0, %s160
      %s163 = sphi 0, %s162
      %s177 = sphi 0, %s163
      %s181 = sphi 0, %s181
      %s183 = sphi 0, %s181
      %s184 = sphi 0, %s183
      %s198 = sphi 0, %s184
      %s204 = sphi 0, %s206
      %s207 = sphi 0, %s204
      %s208 = sphi 0, %s207
      %s224 = sphi 0, %s208
    $region4: #{tpu_custom_call.1} parent=1 // loop_header_branch
      %19 = sbr.rel (%p17) target = $region8
    $region5: #{tpu_custom_call.1} parent=1 // loop_body
      %s21 = ssub.s32 %s16, 1
      %s22 = ssub.s32 %s16, 2
      %s23 = sadd.s32 %s16, 1
      %s24 = ssub.s32 %s16, %s23
      %p25 = scmp.eq.s32.totalorder %s24, 0
      %s27 = sadd.s32 %s26, 1
      %s28 = scalar_select %p25, %s26, %s27
      %p31 = pneg %p25
      %p32 = scmp.eq.s32.totalorder %s16, 3
      %p33 = por %p31, %p32
      %p34 = scmp.ne.s32.totalorder %s26, %s29
      %p35 = scmp.eq.s32.totalorder %s16, 0
      %p36 = por %p34, %p35
      %p37 = scmp.ne.s32.totalorder %s26, %s29
      %p38 = scmp.eq.s32.totalorder %s21, 3
      %p39 = por %p37, %p38
      %p40 = scmp.ne.s32.totalorder %s29, %s30
      %p41 = scmp.eq.s32.totalorder %s21, 0
      %p42 = por %p40, %p41
      %p43 = scmp.ne.s32.totalorder %s29, %s30
      %p44 = scmp.eq.s32.totalorder %s22, 3
      %p45 = por %p43, %p44
      %p47 = scmp.ne.s32.totalorder %s30, %s46
      %p48 = scmp.eq.s32.totalorder %s22, 0
      %p49 = por %p47, %p48
      %s50 = ssub.s32 %s16, %s23
      %p51 = scmp.eq.s32.totalorder %s50, 0
      %s53 = sadd.s32 %s52, 1
      %s54 = scalar_select %p51, %s52, %s53
      %p57 = pneg %p51
      %p58 = scmp.eq.s32.totalorder %s16, 3
      %p59 = por %p57, %p58
      %p60 = scmp.ne.s32.totalorder %s52, %s55
      %p61 = scmp.eq.s32.totalorder %s16, 0
      %p62 = por %p60, %p61
      %p63 = scmp.ne.s32.totalorder %s52, %s55
      %p64 = scmp.eq.s32.totalorder %s21, 3
      %p65 = por %p63, %p64
      %p66 = scmp.ne.s32.totalorder %s55, %s56
      %p67 = scmp.eq.s32.totalorder %s21, 0
      %p68 = por %p66, %p67
      %p69 = scmp.ne.s32.totalorder %s55, %s56
      %p70 = scmp.eq.s32.totalorder %s22, 3
      %p71 = por %p69, %p70
      %p73 = scmp.ne.s32.totalorder %s56, %s72
      %p74 = scmp.eq.s32.totalorder %s22, 0
      %p75 = por %p73, %p74
      %s77 = sadd.s32 %s76, 1
      %p80 = scmp.eq.s32.totalorder %s16, 3
      %p81 = scmp.ne.s32.totalorder %s76, %s78
      %p82 = scmp.eq.s32.totalorder %s16, 0
      %p83 = por %p81, %p82
      %p84 = scmp.ne.s32.totalorder %s76, %s78
      %p85 = scmp.eq.s32.totalorder %s21, 3
      %p86 = por %p84, %p85
      %p87 = scmp.ne.s32.totalorder %s78, %s79
      %p88 = scmp.eq.s32.totalorder %s21, 0
      %p89 = por %p87, %p88
      %p90 = scmp.ne.s32.totalorder %s78, %s79
      %p91 = scmp.eq.s32.totalorder %s22, 3
      %p92 = por %p90, %p91
      %p94 = scmp.ne.s32.totalorder %s79, %s93
      %p95 = scmp.eq.s32.totalorder %s22, 0
      %p96 = por %p94, %p95
      %s98 = sadd.s32 %s97, 1
      %p101 = scmp.eq.s32.totalorder %s16, 3
      %p102 = scmp.ne.s32.totalorder %s97, %s99
      %p103 = scmp.eq.s32.totalorder %s16, 0
      %p104 = por %p102, %p103
      %p105 = scmp.ne.s32.totalorder %s97, %s99
      %p106 = scmp.eq.s32.totalorder %s21, 3
      %p107 = por %p105, %p106
      %p108 = scmp.ne.s32.totalorder %s99, %s100
      %p109 = scmp.eq.s32.totalorder %s21, 0
      %p110 = por %p108, %p109
      %p111 = scmp.ne.s32.totalorder %s99, %s100
      %p112 = scmp.eq.s32.totalorder %s22, 3
      %p113 = por %p111, %p112
      %p115 = scmp.ne.s32.totalorder %s100, %s114
      %p116 = scmp.eq.s32.totalorder %s22, 0
      %p117 = por %p115, %p116
      %s119 = sadd.s32 %s118, 1
      %p122 = scmp.eq.s32.totalorder %s16, 3
      %p123 = scmp.ne.s32.totalorder %s118, %s120
      %p124 = scmp.eq.s32.totalorder %s16, 0
      %p125 = por %p123, %p124
      %p126 = scmp.ne.s32.totalorder %s118, %s120
      %p127 = scmp.eq.s32.totalorder %s21, 3
      %p128 = por %p126, %p127
      %p129 = scmp.ne.s32.totalorder %s120, %s121
      %p130 = scmp.eq.s32.totalorder %s21, 0
      %p131 = por %p129, %p130
      %p132 = scmp.ne.s32.totalorder %s120, %s121
      %p133 = scmp.eq.s32.totalorder %s22, 3
      %p134 = por %p132, %p133
      %p136 = scmp.ne.s32.totalorder %s121, %s135
      %p137 = scmp.eq.s32.totalorder %s22, 0
      %p138 = por %p136, %p137
      %s140 = sadd.s32 %s139, 1
      %p143 = scmp.eq.s32.totalorder %s16, 3
      %p144 = scmp.ne.s32.totalorder %s139, %s141
      %p145 = scmp.eq.s32.totalorder %s16, 0
      %p146 = por %p144, %p145
      %p147 = scmp.ne.s32.totalorder %s139, %s141
      %p148 = scmp.eq.s32.totalorder %s21, 3
      %p149 = por %p147, %p148
      %p150 = scmp.ne.s32.totalorder %s141, %s142
      %p151 = scmp.eq.s32.totalorder %s21, 0
      %p152 = por %p150, %p151
      %p153 = scmp.ne.s32.totalorder %s141, %s142
      %p154 = scmp.eq.s32.totalorder %s22, 3
      %p155 = por %p153, %p154
      %p157 = scmp.ne.s32.totalorder %s142, %s156
      %p158 = scmp.eq.s32.totalorder %s22, 0
      %p159 = por %p157, %p158
      %s161 = sadd.s32 %s160, 1
      %p164 = scmp.eq.s32.totalorder %s16, 3
      %p165 = scmp.ne.s32.totalorder %s160, %s162
      %p166 = scmp.eq.s32.totalorder %s16, 0
      %p167 = por %p165, %p166
      %p168 = scmp.ne.s32.totalorder %s160, %s162
      %p169 = scmp.eq.s32.totalorder %s21, 3
      %p170 = por %p168, %p169
      %p171 = scmp.ne.s32.totalorder %s162, %s163
      %p172 = scmp.eq.s32.totalorder %s21, 0
      %p173 = por %p171, %p172
      %p174 = scmp.ne.s32.totalorder %s162, %s163
      %p175 = scmp.eq.s32.totalorder %s22, 3
      %p176 = por %p174, %p175
      %p178 = scmp.ne.s32.totalorder %s163, %s177
      %p179 = scmp.eq.s32.totalorder %s22, 0
      %p180 = por %p178, %p179
      %s182 = sadd.s32 %s181, 1
      %p185 = scmp.eq.s32.totalorder %s16, 3
      %p186 = scmp.ne.s32.totalorder %s181, %s183
      %p187 = scmp.eq.s32.totalorder %s16, 0
      %p188 = por %p186, %p187
      %p189 = scmp.ne.s32.totalorder %s181, %s183
      %p190 = scmp.eq.s32.totalorder %s21, 3
      %p191 = por %p189, %p190
      %p192 = scmp.ne.s32.totalorder %s183, %s184
      %p193 = scmp.eq.s32.totalorder %s21, 0
      %p194 = por %p192, %p193
      %p195 = scmp.ne.s32.totalorder %s183, %s184
      %p196 = scmp.eq.s32.totalorder %s22, 3
      %p197 = por %p195, %p196
      %p199 = scmp.ne.s32.totalorder %s184, %s198
      %p200 = scmp.eq.s32.totalorder %s22, 0
      %p201 = por %p199, %p200
      %s202 = ssub.s32 %s16, %s23
      %p203 = scmp.eq.s32.totalorder %s202, 0
      %s205 = sadd.s32 %s204, 1
      %s206 = scalar_select %p203, %s204, %s205
      %p209 = pneg %p203
      %p210 = scmp.eq.s32.totalorder %s16, 3
      %p211 = por %p209, %p210
      %p212 = scmp.ne.s32.totalorder %s204, %s207
      %p213 = scmp.eq.s32.totalorder %s16, 0
      %p214 = por %p212, %p213
      %p215 = scmp.ne.s32.totalorder %s204, %s207
      %p216 = scmp.eq.s32.totalorder %s21, 3
      %p217 = por %p215, %p216
      %p218 = scmp.ne.s32.totalorder %s207, %s208
      %p219 = scmp.eq.s32.totalorder %s21, 0
      %p220 = por %p218, %p219
      %p221 = scmp.ne.s32.totalorder %s207, %s208
      %p222 = scmp.eq.s32.totalorder %s22, 3
      %p223 = por %p221, %p222
      %p225 = scmp.ne.s32.totalorder %s208, %s224
      %p226 = scmp.eq.s32.totalorder %s22, 0
      %p227 = por %p225, %p226
      %p228 = scmp.le.s32.totalorder 1, %s16
      %p229 = scmp.lt.s32.totalorder %s16, 5
      %p230 = pnand %p228, %p229
      %p231 = pneg %p230
      // Predicated region
      $region9: #{tpu_custom_call.1} parent=5 // pred_check
        _
      $region10: #{tpu_custom_call.1} parent=5 // pred_check_branch
        %233 = sbr.rel (%p230) target = $region12
      $region11: #{tpu_custom_call.1} parent=5 // pred_region
        %s234 = ssub.s32 %s16, 1
        // Predicated region
        $region13: #{tpu_custom_call.1} parent=11 // pred_check
          %p235 = pneg %p89
        $region14: #{tpu_custom_call.1} parent=11 // pred_check_branch
          %237 = sbr.rel (%p235) target = $region16
        $region15: #{tpu_custom_call.1} parent=11 // pred_region
          _
        $region16: #{tpu_custom_call.1} parent=11 // pred_fallthru
          _
        // Predicated region
        $region17: #{tpu_custom_call.1} parent=11 // pred_check
          %p238 = pneg %p110
        $region18: #{tpu_custom_call.1} parent=11 // pred_check_branch
          %240 = sbr.rel (%p238) target = $region20
        $region19: #{tpu_custom_call.1} parent=11 // pred_region
          _
        $region20: #{tpu_custom_call.1} parent=11 // pred_fallthru
          _
        // Predicated region
        $region21: #{tpu_custom_call.1} parent=11 // pred_check
          %p241 = pneg %p131
        $region22: #{tpu_custom_call.1} parent=11 // pred_check_branch
          %243 = sbr.rel (%p241) target = $region24
        $region23: #{tpu_custom_call.1} parent=11 // pred_region
          _
        $region24: #{tpu_custom_call.1} parent=11 // pred_fallthru
          _
        // Predicated region
        $region25: #{tpu_custom_call.1} parent=11 // pred_check
          %p244 = pneg %p152
        $region26: #{tpu_custom_call.1} parent=11 // pred_check_branch
          %246 = sbr.rel (%p244) target = $region28
        $region27: #{tpu_custom_call.1} parent=11 // pred_region
          _
        $region28: #{tpu_custom_call.1} parent=11 // pred_fallthru
          _
        // Predicated region
        $region29: #{tpu_custom_call.1} parent=11 // pred_check
          %p247 = pneg %p173
        $region30: #{tpu_custom_call.1} parent=11 // pred_check_branch
          %249 = sbr.rel (%p247) target = $region32
        $region31: #{tpu_custom_call.1} parent=11 // pred_region
          _
        $region32: #{tpu_custom_call.1} parent=11 // pred_fallthru
          _
        // Predicated region
        $region33: #{tpu_custom_call.1} parent=11 // pred_check
          %p250 = pneg %p194
        $region34: #{tpu_custom_call.1} parent=11 // pred_check_branch
          %252 = sbr.rel (%p250) target = $region36
        $region35: #{tpu_custom_call.1} parent=11 // pred_region
          _
        $region36: #{tpu_custom_call.1} parent=11 // pred_fallthru
          _
      $region12: #{tpu_custom_call.1} parent=5 // pred_fallthru
        _
      %p253 = scmp.lt.s32.totalorder %s16, 4
      // Predicated region
      $region37: #{tpu_custom_call.1} parent=5 // pred_check
        %p254 = pneg %p253
      $region38: #{tpu_custom_call.1} parent=5 // pred_check_branch
        %256 = sbr.rel (%p254) target = $region40
      $region39: #{tpu_custom_call.1} parent=5 // pred_region
        // Predicated region
        $region41: #{tpu_custom_call.1} parent=39 // pred_check
          %p257 = pneg %p36
        $region42: #{tpu_custom_call.1} parent=39 // pred_check_branch
          %259 = sbr.rel (%p257) target = $region44
        $region43: #{tpu_custom_call.1} parent=39 // pred_region
          %s260 = smul.u32 32, %s16
          %s261 = ssub.s32 125, %s260
          %p262 = scmp.lt.s32.totalorder %s261, 32
          %s263 = scalar_select %p262, %s261, 32
          %s264 = smul.u32 128, %s263
          %p265 = scmp.lt.s32.totalorder %s260, 124
          %s266 = scalar_select %p265, %s260, 124
          %s267 = smul.addr %s266, 8
          %s268 = scalar_lea.vmem %s0, %s267
          %s269 = smul.u32 32, %s16
          %s270 = ssub.s32 125, %s269
          %p271 = scmp.lt.s32.totalorder %s270, 32
          %s272 = scalar_select %p271, %s270, 32
          %s273 = smul.u32 128, %s272
        $region44: #{tpu_custom_call.1} parent=39 // pred_fallthru
          _
        // Predicated region
        $region45: #{tpu_custom_call.1} parent=39 // pred_check
          %p274 = pneg %p62
        $region46: #{tpu_custom_call.1} parent=39 // pred_check_branch
          %276 = sbr.rel (%p274) target = $region48
        $region47: #{tpu_custom_call.1} parent=39 // pred_region
          %s277 = smul.u32 32, %s16
          %s278 = ssub.s32 125, %s277
          %p279 = scmp.lt.s32.totalorder %s278, 32
          %s280 = scalar_select %p279, %s278, 32
          %s281 = smul.u32 128, %s280
          %p282 = scmp.lt.s32.totalorder %s277, 124
          %s283 = scalar_select %p282, %s277, 124
          %s284 = smul.addr %s283, 8
          %s285 = scalar_lea.vmem %s1, %s284
          %s286 = smul.u32 32, %s16
          %s287 = ssub.s32 125, %s286
          %p288 = scmp.lt.s32.totalorder %s287, 32
          %s289 = scalar_select %p288, %s287, 32
          %s290 = smul.u32 128, %s289
        $region48: #{tpu_custom_call.1} parent=39 // pred_fallthru
          _
      $region40: #{tpu_custom_call.1} parent=5 // pred_fallthru
        _
      %p291 = scmp.le.s32.totalorder 1, %s16
      %p292 = scmp.lt.s32.totalorder %s16, 5
      %p293 = pnand %p291, %p292
      %p294 = pneg %p293
      // Predicated region
      $region49: #{tpu_custom_call.1} parent=5 // pred_check
        _
      $region50: #{tpu_custom_call.1} parent=5 // pred_check_branch
        %296 = sbr.rel (%p293) target = $region52
      $region51: #{tpu_custom_call.1} parent=5 // pred_region
        %s297 = ssub.s32 %s16, 1
        %s298 = smul.u32 32, %s21
        %s299 = ssub.s32 125, %s298
        %p300 = scmp.lt.s32.totalorder %s299, 32
        %s301 = scalar_select %p300, %s299, 32
        %s302 = smul.u32 128, %s301
        %p303 = scmp.lt.s32.totalorder %s298, 124
        %s304 = scalar_select %p303, %s298, 124
        %s305 = smul.addr %s304, 8
        %s306 = scalar_lea.vmem %s0, %s305
        %p307 = pneg %p42
        %p308 = pneg %p39
        %s309 = smul.u32 32, %s21
        %s310 = ssub.s32 125, %s309
        %p311 = scmp.lt.s32.totalorder %s310, 32
        %s312 = scalar_select %p311, %s310, 32
        %s313 = smul.u32 128, %s312
        %p314 = scmp.lt.s32.totalorder %s309, 124
        %s315 = scalar_select %p314, %s309, 124
        %s316 = smul.addr %s315, 8
        %s317 = scalar_lea.vmem %s1, %s316
        %p318 = pneg %p68
        %p319 = pneg %p65
        %p320 = pneg %p89
        %p321 = pneg %p86
        %p322 = pneg %p110
        %p323 = pneg %p107
        %p324 = pneg %p131
        %p325 = pneg %p128
        %p326 = pneg %p152
        %p327 = pneg %p149
        %p328 = pneg %p173
        %p329 = pneg %p170
        %p330 = pneg %p194
        %p331 = pneg %p191
        %p332 = pneg %p220
        %p333 = pneg %p217
        %s334 = sand.u32 %s207, 1
        %s335 = sand.u32 %s207, 1
        %s336 = smul.addr %s335, 256
        %s337 = scalar_lea.vmem [#allocation3], %s336
        %s338 = smul.u32 32, %s21
        %s339 = ssub.s32 125, %s338
        %p340 = scmp.lt.s32.totalorder %s339, 32
        %s341 = scalar_select %p340, %s339, 32
        %s342 = smul.u32 128, %s341
        %p343 = scmp.lt.s32.totalorder %s338, 124
        %s344 = scalar_select %p343, %s338, 124
        %s345 = smul.addr %s344, 8
        %s346 = scalar_lea.vmem %s0, %s345
        %s347 = smul.u32 32, %s21
        %s348 = ssub.s32 125, %s347
        %p349 = scmp.lt.s32.totalorder %s348, 32
        %s350 = scalar_select %p349, %s348, 32
        %s351 = smul.u32 128, %s350
        %s352 = smul.u32 32, %s21
        %s353 = ssub.s32 125, %s352
        %p354 = scmp.lt.s32.totalorder %s353, 32
        %s355 = scalar_select %p354, %s353, 32
        %s356 = smul.u32 128, %s355
        %p357 = scmp.lt.s32.totalorder %s352, 124
        %s358 = scalar_select %p357, %s352, 124
        %s359 = smul.addr %s358, 8
        %s360 = scalar_lea.vmem %s1, %s359
        %s361 = smul.u32 32, %s21
        %s362 = ssub.s32 125, %s361
        %p363 = scmp.lt.s32.totalorder %s362, 32
        %s364 = scalar_select %p363, %s362, 32
        %s365 = smul.u32 128, %s364
        %s366 = smul.u32 32, %s21
        %s367 = ssub.s32 125, %s366
        %p368 = scmp.lt.s32.totalorder %s367, 32
        %s369 = scalar_select %p368, %s367, 32
        %s370 = smul.u32 128, %s369
        %v371 = vld [vmem:[%s346] sm:$0xff]
        %v372 = vld [vmem:[%s346 + $0x8] sm:$0xff]
        %v373 = vld [vmem:[%s346 + $0x10] sm:$0xff]
        %v374 = vld [vmem:[%s346 + $0x18] sm:$0xff]
        %v375 = vld [vmem:[%s346 + $0x20] sm:$0xff]
        %v376 = vld [vmem:[%s346 + $0x28] sm:$0xff]
        %v377 = vld [vmem:[%s346 + $0x30] sm:$0xff]
        %v378 = vld [vmem:[%s346 + $0x38] sm:$0xff]
        %v379 = vld [vmem:[%s346 + $0x40] sm:$0xff]
        %v380 = vld [vmem:[%s346 + $0x48] sm:$0xff]
        %v381 = vld [vmem:[%s346 + $0x50] sm:$0xff]
        %v382 = vld [vmem:[%s346 + $0x58] sm:$0xff]
        %v383 = vld [vmem:[%s346 + $0x60] sm:$0xff]
        %v384 = vld [vmem:[%s346 + $0x68] sm:$0xff]
        %v385 = vld [vmem:[%s346 + $0x70] sm:$0xff]
        %v386 = vld [vmem:[%s346 + $0x78] sm:$0xff]
        %v387 = vld [vmem:[%s346 + $0x80] sm:$0xff]
        %v388 = vld [vmem:[%s346 + $0x88] sm:$0xff]
        %v389 = vld [vmem:[%s346 + $0x90] sm:$0xff]
        %v390 = vld [vmem:[%s346 + $0x98] sm:$0xff]
        %v391 = vld [vmem:[%s346 + $0xa0] sm:$0xff]
        %v392 = vld [vmem:[%s346 + $0xa8] sm:$0xff]
        %v393 = vld [vmem:[%s346 + $0xb0] sm:$0xff]
        %v394 = vld [vmem:[%s346 + $0xb8] sm:$0xff]
        %v395 = vld [vmem:[%s346 + $0xc0] sm:$0xff]
        %v396 = vld [vmem:[%s346 + $0xc8] sm:$0xff]
        %v397 = vld [vmem:[%s346 + $0xd0] sm:$0xff]
        %v398 = vld [vmem:[%s346 + $0xd8] sm:$0xff]
        %v399 = vld [vmem:[%s346 + $0xe0] sm:$0xff]
        %v400 = vld [vmem:[%s346 + $0xe8] sm:$0xff]
        %v401 = vld [vmem:[%s346 + $0xf0] sm:$0xff]
        %v402 = vld [vmem:[%s346 + $0xf8] sm:$0xff]
        %v403 = vld [vmem:[%s360] sm:$0xff]
        %v404 = vld [vmem:[%s360 + $0x8] sm:$0xff]
        %v405 = vld [vmem:[%s360 + $0x10] sm:$0xff]
        %v406 = vld [vmem:[%s360 + $0x18] sm:$0xff]
        %v407 = vld [vmem:[%s360 + $0x20] sm:$0xff]
        %v408 = vld [vmem:[%s360 + $0x28] sm:$0xff]
        %v409 = vld [vmem:[%s360 + $0x30] sm:$0xff]
        %v410 = vld [vmem:[%s360 + $0x38] sm:$0xff]
        %v411 = vld [vmem:[%s360 + $0x40] sm:$0xff]
        %v412 = vld [vmem:[%s360 + $0x48] sm:$0xff]
        %v413 = vld [vmem:[%s360 + $0x50] sm:$0xff]
        %v414 = vld [vmem:[%s360 + $0x58] sm:$0xff]
        %v415 = vld [vmem:[%s360 + $0x60] sm:$0xff]
        %v416 = vld [vmem:[%s360 + $0x68] sm:$0xff]
        %v417 = vld [vmem:[%s360 + $0x70] sm:$0xff]
        %v418 = vld [vmem:[%s360 + $0x78] sm:$0xff]
        %v419 = vld [vmem:[%s360 + $0x80] sm:$0xff]
        %v420 = vld [vmem:[%s360 + $0x88] sm:$0xff]
        %v421 = vld [vmem:[%s360 + $0x90] sm:$0xff]
        %v422 = vld [vmem:[%s360 + $0x98] sm:$0xff]
        %v423 = vld [vmem:[%s360 + $0xa0] sm:$0xff]
        %v424 = vld [vmem:[%s360 + $0xa8] sm:$0xff]
        %v425 = vld [vmem:[%s360 + $0xb0] sm:$0xff]
        %v426 = vld [vmem:[%s360 + $0xb8] sm:$0xff]
        %v427 = vld [vmem:[%s360 + $0xc0] sm:$0xff]
        %v428 = vld [vmem:[%s360 + $0xc8] sm:$0xff]
        %v429 = vld [vmem:[%s360 + $0xd0] sm:$0xff]
        %v430 = vld [vmem:[%s360 + $0xd8] sm:$0xff]
        %v431 = vld [vmem:[%s360 + $0xe0] sm:$0xff]
        %v432 = vld [vmem:[%s360 + $0xe8] sm:$0xff]
        %v433 = vld [vmem:[%s360 + $0xf0] sm:$0xff]
        %v434 = vld [vmem:[%s360 + $0xf8] sm:$0xff]
        %v435 = vmul.f32 %v371, %v403
        %v436 = vmul.f32 %v372, %v404
        %v437 = vmul.f32 %v373, %v405
        %v438 = vmul.f32 %v374, %v406
        %v439 = vmul.f32 %v375, %v407
        %v440 = vmul.f32 %v376, %v408
        %v441 = vmul.f32 %v377, %v409
        %v442 = vmul.f32 %v378, %v410
        %v443 = vmul.f32 %v379, %v411
        %v444 = vmul.f32 %v380, %v412
        %v445 = vmul.f32 %v381, %v413
        %v446 = vmul.f32 %v382, %v414
        %v447 = vmul.f32 %v383, %v415
        %v448 = vmul.f32 %v384, %v416
        %v449 = vmul.f32 %v385, %v417
        %v450 = vmul.f32 %v386, %v418
        %v451 = vmul.f32 %v387, %v419
        %v452 = vmul.f32 %v388, %v420
        %v453 = vmul.f32 %v389, %v421
        %v454 = vmul.f32 %v390, %v422
        %v455 = vmul.f32 %v391, %v423
        %v456 = vmul.f32 %v392, %v424
        %v457 = vmul.f32 %v393, %v425
        %v458 = vmul.f32 %v394, %v426
        %v459 = vmul.f32 %v395, %v427
        %v460 = vmul.f32 %v396, %v428
        %v461 = vmul.f32 %v397, %v429
        %v462 = vmul.f32 %v398, %v430
        %v463 = vmul.f32 %v399, %v431
        %v464 = vmul.f32 %v400, %v432
        %v465 = vmul.f32 %v401, %v433
        %v466 = vmul.f32 %v402, %v434
        %v467 = vld [vmem:[%s2] sm:$0xff]
        %v468 = vld [vmem:[%s2 + $0x8] sm:$0xff]
        %v469 = vld [vmem:[%s2 + $0x10] sm:$0xff]
        %v470 = vld [vmem:[%s2 + $0x18] sm:$0xff]
        %v471 = vld [vmem:[%s3] sm:$0x1]
        %v473 = vlaneseq
        %v474 = vshrl.u32 %v473, 7
        %v475 = vsub.s32 0, %v474
        %v476 = vrot.slane %v471, %v475
        %vm478 = vcmask 261120
        %v480 = vsel %vm478, %v435, 0
        %v483 = vsel %vm478, %v436, 0
        %v486 = vsel %vm478, %v437, 0
        %v489 = vsel %vm478, %v438, 0
        %v492 = vsel %vm478, %v439, 0
        %v495 = vsel %vm478, %v440, 0
        %v498 = vsel %vm478, %v441, 0
        %v501 = vsel %vm478, %v442, 0
        %v504 = vsel %vm478, %v443, 0
        %v507 = vsel %vm478, %v444, 0
        %v510 = vsel %vm478, %v445, 0
        %v513 = vsel %vm478, %v446, 0
        %v516 = vsel %vm478, %v447, 0
        %v519 = vsel %vm478, %v448, 0
        %v522 = vsel %vm478, %v449, 0
        %v525 = vsel %vm478, %v450, 0
        %v528 = vsel %vm478, %v451, 0
        %v531 = vsel %vm478, %v452, 0
        %v534 = vsel %vm478, %v453, 0
        %v537 = vsel %vm478, %v454, 0
        %v540 = vsel %vm478, %v455, 0
        %v543 = vsel %vm478, %v456, 0
        %v546 = vsel %vm478, %v457, 0
        %v549 = vsel %vm478, %v458, 0
        %v552 = vsel %vm478, %v459, 0
        %v555 = vsel %vm478, %v460, 0
        %v558 = vsel %vm478, %v461, 0
        %v561 = vsel %vm478, %v462, 0
        %v564 = vsel %vm478, %v463, 0
        %v567 = vsel %vm478, %v464, 0
        %v570 = vsel %vm478, %v465, 0
        %v573 = vsel %vm478, %v466, 0
        %575 = vmatprep.subr.mxu0 0.0
        %576 = vmatpush1.msra.mxu0 0.0
        %577 = vmatprep.subr.mxu0 0.0
        %578 = vmatpush1.msra.mxu0 0.0
        %579 = vmatprep.subr.mxu0 0.0
        %580 = vmatpush1.msra.mxu0 0.0
        %581 = vmatprep.subr.mxu0 0.0
        %582 = vmatpush1.msra.mxu0 0.0
        %583 = vmatprep.subr.mxu0 0.0
        %584 = vmatpush1.msra.mxu0 0.0
        %585 = vmatprep.subr.mxu0 0.0
        %586 = vmatpush1.msra.mxu0 0.0
        %587 = vmatprep.subr.mxu0 0.0
        %588 = vmatpush1.msra.mxu0 0.0
        %589 = vmatprep.subr.mxu0 0.0
        %590 = vmatpush1.msra.mxu0 0.0
        %591 = vmatprep.subr.mxu0 0.0
        %592 = vmatpush1.msra.mxu0 0.0
        %593 = vmatprep.subr.mxu0 0.0
        %594 = vmatpush1.msra.mxu0 0.0
        %595 = vmatprep.subr.mxu0 0.0
        %596 = vmatpush1.msra.mxu0 0.0
        %597 = vmatprep.subr.mxu0 0.0
        %598 = vmatpush1.msra.mxu0 0.0
        %599 = vmatprep.subr.mxu0 0.0
        %600 = vmatpush1.msra.mxu0 %v470
        %601 = vmatprep.subr.mxu0 0.0
        %602 = vmatpush1.msra.mxu0 %v469
        %603 = vmatprep.subr.mxu0 0.0
        %604 = vmatpush1.msra.mxu0 %v468
        %605 = vmatprep.subr.mxu0 0.0
        %606 = vmatpush1.msra.mxu0 %v467
        %607 = vmatprep.subr.mxu0 0.0
        %608 = vmatpush2.msra.mxu0 0.0
        %609 = vmatprep.subr.mxu0 0.0
        %610 = vmatpush2.msra.mxu0 0.0
        %611 = vmatprep.subr.mxu0 0.0
        %612 = vmatpush2.msra.mxu0 0.0
        %613 = vmatprep.subr.mxu0 0.0
        %614 = vmatpush2.msra.mxu0 0.0
        %615 = vmatprep.subr.mxu0 0.0
        %616 = vmatpush2.msra.mxu0 0.0
        %617 = vmatprep.subr.mxu0 0.0
        %618 = vmatpush2.msra.mxu0 0.0
        %619 = vmatprep.subr.mxu0 0.0
        %620 = vmatpush2.msra.mxu0 0.0
        %621 = vmatprep.subr.mxu0 0.0
        %622 = vmatpush2.msra.mxu0 0.0
        %623 = vmatprep.subr.mxu0 0.0
        %624 = vmatpush2.msra.mxu0 0.0
        %625 = vmatprep.subr.mxu0 0.0
        %626 = vmatpush2.msra.mxu0 0.0
        %627 = vmatprep.subr.mxu0 0.0
        %628 = vmatpush2.msra.mxu0 0.0
        %629 = vmatprep.subr.mxu0 0.0
        %630 = vmatpush2.msra.mxu0 0.0
        %631 = vmatprep.subr.mxu0 0.0
        %632 = vmatpush2.msra.mxu0 0.0
        %633 = vmatprep.subr.mxu0 0.0
        %634 = vmatpush2.msra.mxu0 0.0
        %635 = vmatprep.subr.mxu0 0.0
        %636 = vmatpush2.msra.mxu0 0.0
        %637 = vmatprep.subr.mxu0 0.0
        %638 = vmatpush2.msra.mxu0 0.0
        %639 = vmatprep.mubr.f32.mxu0 0.0
        %640 = vmatmul.mubr.f32.gmra.mxu0 %v480
        %v641 = vpop.f32.mrf.mxu0
        %v642 = vadd.f32 %v476, %v641
        %v643 = vpop.f32.mrf.mxu0
        %644 = vmatprep.mubr.f32.mxu0 0.0
        %645 = vmatmul.mubr.f32.gmra.mxu0 %v483
        %v646 = vpop.f32.mrf.mxu0
        %v647 = vadd.f32 %v476, %v646
        %v648 = vpop.f32.mrf.mxu0
        %649 = vmatprep.mubr.f32.mxu0 0.0
        %650 = vmatmul.mubr.f32.gmra.mxu0 %v486
        %v651 = vpop.f32.mrf.mxu0
        %v652 = vadd.f32 %v476, %v651
        %v653 = vpop.f32.mrf.mxu0
        %654 = vmatprep.mubr.f32.mxu0 0.0
        %655 = vmatmul.mubr.f32.gmra.mxu0 %v489
        %v656 = vpop.f32.mrf.mxu0
        %v657 = vadd.f32 %v476, %v656
        %v658 = vpop.f32.mrf.mxu0
        %659 = vmatprep.mubr.f32.mxu0 0.0
        %660 = vmatmul.mubr.f32.gmra.mxu0 %v492
        %v661 = vpop.f32.mrf.mxu0
        %v662 = vadd.f32 %v476, %v661
        %v663 = vpop.f32.mrf.mxu0
        %664 = vmatprep.mubr.f32.mxu0 0.0
        %665 = vmatmul.mubr.f32.gmra.mxu0 %v495
        %v666 = vpop.f32.mrf.mxu0
        %v667 = vadd.f32 %v476, %v666
        %v668 = vpop.f32.mrf.mxu0
        %669 = vmatprep.mubr.f32.mxu0 0.0
        %670 = vmatmul.mubr.f32.gmra.mxu0 %v498
        %v671 = vpop.f32.mrf.mxu0
        %v672 = vadd.f32 %v476, %v671
        %v673 = vpop.f32.mrf.mxu0
        %674 = vmatprep.mubr.f32.mxu0 0.0
        %675 = vmatmul.mubr.f32.gmra.mxu0 %v501
        %v676 = vpop.f32.mrf.mxu0
        %v677 = vadd.f32 %v476, %v676
        %v678 = vpop.f32.mrf.mxu0
        %679 = vmatprep.mubr.f32.mxu0 0.0
        %680 = vmatmul.mubr.f32.gmra.mxu0 %v504
        %v681 = vpop.f32.mrf.mxu0
        %v682 = vadd.f32 %v476, %v681
        %v683 = vpop.f32.mrf.mxu0
        %684 = vmatprep.mubr.f32.mxu0 0.0
        %685 = vmatmul.mubr.f32.gmra.mxu0 %v507
        %v686 = vpop.f32.mrf.mxu0
        %v687 = vadd.f32 %v476, %v686
        %v688 = vpop.f32.mrf.mxu0
        %689 = vmatprep.mubr.f32.mxu0 0.0
        %690 = vmatmul.mubr.f32.gmra.mxu0 %v510
        %v691 = vpop.f32.mrf.mxu0
        %v692 = vadd.f32 %v476, %v691
        %v693 = vpop.f32.mrf.mxu0
        %694 = vmatprep.mubr.f32.mxu0 0.0
        %695 = vmatmul.mubr.f32.gmra.mxu0 %v513
        %v696 = vpop.f32.mrf.mxu0
        %v697 = vadd.f32 %v476, %v696
        %v698 = vpop.f32.mrf.mxu0
        %699 = vmatprep.mubr.f32.mxu0 0.0
        %700 = vmatmul.mubr.f32.gmra.mxu0 %v516
        %v701 = vpop.f32.mrf.mxu0
        %v702 = vadd.f32 %v476, %v701
        %v703 = vpop.f32.mrf.mxu0
        %704 = vmatprep.mubr.f32.mxu0 0.0
        %705 = vmatmul.mubr.f32.gmra.mxu0 %v519
        %v706 = vpop.f32.mrf.mxu0
        %v707 = vadd.f32 %v476, %v706
        %v708 = vpop.f32.mrf.mxu0
        %709 = vmatprep.mubr.f32.mxu0 0.0
        %710 = vmatmul.mubr.f32.gmra.mxu0 %v522
        %v711 = vpop.f32.mrf.mxu0
        %v712 = vadd.f32 %v476, %v711
        %v713 = vpop.f32.mrf.mxu0
        %714 = vmatprep.mubr.f32.mxu0 0.0
        %715 = vmatmul.mubr.f32.gmra.mxu0 %v525
        %v716 = vpop.f32.mrf.mxu0
        %v717 = vadd.f32 %v476, %v716
        %v718 = vpop.f32.mrf.mxu0
        %719 = vmatprep.mubr.f32.mxu0 0.0
        %720 = vmatmul.mubr.f32.gmra.mxu0 %v528
        %v721 = vpop.f32.mrf.mxu0
        %v722 = vadd.f32 %v476, %v721
        %v723 = vpop.f32.mrf.mxu0
        %724 = vmatprep.mubr.f32.mxu0 0.0
        %725 = vmatmul.mubr.f32.gmra.mxu0 %v531
        %v726 = vpop.f32.mrf.mxu0
        %v727 = vadd.f32 %v476, %v726
        %v728 = vpop.f32.mrf.mxu0
        %729 = vmatprep.mubr.f32.mxu0 0.0
        %730 = vmatmul.mubr.f32.gmra.mxu0 %v534
        %v731 = vpop.f32.mrf.mxu0
        %v732 = vadd.f32 %v476, %v731
        %v733 = vpop.f32.mrf.mxu0
        %734 = vmatprep.mubr.f32.mxu0 0.0
        %735 = vmatmul.mubr.f32.gmra.mxu0 %v537
        %v736 = vpop.f32.mrf.mxu0
        %v737 = vadd.f32 %v476, %v736
        %v738 = vpop.f32.mrf.mxu0
        %739 = vmatprep.mubr.f32.mxu0 0.0
        %740 = vmatmul.mubr.f32.gmra.mxu0 %v540
        %v741 = vpop.f32.mrf.mxu0
        %v742 = vadd.f32 %v476, %v741
        %v743 = vpop.f32.mrf.mxu0
        %744 = vmatprep.mubr.f32.mxu0 0.0
        %745 = vmatmul.mubr.f32.gmra.mxu0 %v543
        %v746 = vpop.f32.mrf.mxu0
        %v747 = vadd.f32 %v476, %v746
        %v748 = vpop.f32.mrf.mxu0
        %749 = vmatprep.mubr.f32.mxu0 0.0
        %750 = vmatmul.mubr.f32.gmra.mxu0 %v546
        %v751 = vpop.f32.mrf.mxu0
        %v752 = vadd.f32 %v476, %v751
        %v753 = vpop.f32.mrf.mxu0
        %754 = vmatprep.mubr.f32.mxu0 0.0
        %755 = vmatmul.mubr.f32.gmra.mxu0 %v549
        %v756 = vpop.f32.mrf.mxu0
        %v757 = vadd.f32 %v476, %v756
        %v758 = vpop.f32.mrf.mxu0
        %759 = vmatprep.mubr.f32.mxu0 0.0
        %760 = vmatmul.mubr.f32.gmra.mxu0 %v552
        %v761 = vpop.f32.mrf.mxu0
        %v762 = vadd.f32 %v476, %v761
        %v763 = vpop.f32.mrf.mxu0
        %764 = vmatprep.mubr.f32.mxu0 0.0
        %765 = vmatmul.mubr.f32.gmra.mxu0 %v555
        %v766 = vpop.f32.mrf.mxu0
        %v767 = vadd.f32 %v476, %v766
        %v768 = vpop.f32.mrf.mxu0
        %769 = vmatprep.mubr.f32.mxu0 0.0
        %770 = vmatmul.mubr.f32.gmra.mxu0 %v558
        %v771 = vpop.f32.mrf.mxu0
        %v772 = vadd.f32 %v476, %v771
        %v773 = vpop.f32.mrf.mxu0
        %774 = vmatprep.mubr.f32.mxu0 0.0
        %775 = vmatmul.mubr.f32.gmra.mxu0 %v561
        %v776 = vpop.f32.mrf.mxu0
        %v777 = vadd.f32 %v476, %v776
        %v778 = vpop.f32.mrf.mxu0
        %779 = vmatprep.mubr.f32.mxu0 0.0
        %780 = vmatmul.mubr.f32.gmra.mxu0 %v564
        %v781 = vpop.f32.mrf.mxu0
        %v782 = vadd.f32 %v476, %v781
        %v783 = vpop.f32.mrf.mxu0
        %784 = vmatprep.mubr.f32.mxu0 0.0
        %785 = vmatmul.mubr.f32.gmra.mxu0 %v567
        %v786 = vpop.f32.mrf.mxu0
        %v787 = vadd.f32 %v476, %v786
        %v788 = vpop.f32.mrf.mxu0
        %789 = vmatprep.mubr.f32.mxu0 0.0
        %790 = vmatmul.mubr.f32.gmra.mxu0 %v570
        %v791 = vpop.f32.mrf.mxu0
        %v792 = vadd.f32 %v476, %v791
        %v793 = vpop.f32.mrf.mxu0
        %794 = vmatprep.mubr.f32.mxu0 0.0
        %795 = vmatmul.mubr.f32.gmra.mxu0 %v573
        %v796 = vpop.f32.mrf.mxu0
        %v797 = vadd.f32 %v476, %v796
        %v798 = vpop.f32.mrf.mxu0
        %799 = vdwg.mxu0
        %v800 = vmax.f32 %v642, 0.0
        %v801 = vmax.f32 %v647, 0.0
        %v802 = vmax.f32 %v652, 0.0
        %v803 = vmax.f32 %v657, 0.0
        %v804 = vmax.f32 %v662, 0.0
        %v805 = vmax.f32 %v667, 0.0
        %v806 = vmax.f32 %v672, 0.0
        %v807 = vmax.f32 %v677, 0.0
        %v808 = vmax.f32 %v682, 0.0
        %v809 = vmax.f32 %v687, 0.0
        %v810 = vmax.f32 %v692, 0.0
        %v811 = vmax.f32 %v697, 0.0
        %v812 = vmax.f32 %v702, 0.0
        %v813 = vmax.f32 %v707, 0.0
        %v814 = vmax.f32 %v712, 0.0
        %v815 = vmax.f32 %v717, 0.0
        %v816 = vmax.f32 %v722, 0.0
        %v817 = vmax.f32 %v727, 0.0
        %v818 = vmax.f32 %v732, 0.0
        %v819 = vmax.f32 %v737, 0.0
        %v820 = vmax.f32 %v742, 0.0
        %v821 = vmax.f32 %v747, 0.0
        %v822 = vmax.f32 %v752, 0.0
        %v823 = vmax.f32 %v757, 0.0
        %v824 = vmax.f32 %v762, 0.0
        %v825 = vmax.f32 %v767, 0.0
        %v826 = vmax.f32 %v772, 0.0
        %v827 = vmax.f32 %v777, 0.0
        %v828 = vmax.f32 %v782, 0.0
        %v829 = vmax.f32 %v787, 0.0
        %v830 = vmax.f32 %v792, 0.0
        %v831 = vmax.f32 %v797, 0.0
        %v832 = vld [vmem:[%s4] sm:$0xff]
        %v833 = vld [vmem:[%s4 + $0x8] sm:$0xff]
        %v834 = vld [vmem:[%s4 + $0x10] sm:$0xff]
        %v835 = vld [vmem:[%s4 + $0x18] sm:$0xff]
        %v836 = vld [vmem:[%s4 + $0x20] sm:$0xff]
        %v837 = vld [vmem:[%s4 + $0x28] sm:$0xff]
        %v838 = vld [vmem:[%s4 + $0x30] sm:$0xff]
        %v839 = vld [vmem:[%s4 + $0x38] sm:$0xff]
        %v840 = vld [vmem:[%s5] sm:$0x1]
        %v842 = vlaneseq
        %v843 = vshrl.u32 %v842, 7
        %v844 = vsub.s32 0, %v843
        %v845 = vrot.slane %v840, %v844
        %vm847 = vcmask 523264
        %v849 = vsel %vm847, %v800, 0
        %v852 = vsel %vm847, %v801, 0
        %v855 = vsel %vm847, %v802, 0
        %v858 = vsel %vm847, %v803, 0
        %v861 = vsel %vm847, %v804, 0
        %v864 = vsel %vm847, %v805, 0
        %v867 = vsel %vm847, %v806, 0
        %v870 = vsel %vm847, %v807, 0
        %v873 = vsel %vm847, %v808, 0
        %v876 = vsel %vm847, %v809, 0
        %v879 = vsel %vm847, %v810, 0
        %v882 = vsel %vm847, %v811, 0
        %v885 = vsel %vm847, %v812, 0
        %v888 = vsel %vm847, %v813, 0
        %v891 = vsel %vm847, %v814, 0
        %v894 = vsel %vm847, %v815, 0
        %v897 = vsel %vm847, %v816, 0
        %v900 = vsel %vm847, %v817, 0
        %v903 = vsel %vm847, %v818, 0
        %v906 = vsel %vm847, %v819, 0
        %v909 = vsel %vm847, %v820, 0
        %v912 = vsel %vm847, %v821, 0
        %v915 = vsel %vm847, %v822, 0
        %v918 = vsel %vm847, %v823, 0
        %v921 = vsel %vm847, %v824, 0
        %v924 = vsel %vm847, %v825, 0
        %v927 = vsel %vm847, %v826, 0
        %v930 = vsel %vm847, %v827, 0
        %v933 = vsel %vm847, %v828, 0
        %v936 = vsel %vm847, %v829, 0
        %v939 = vsel %vm847, %v830, 0
        %v942 = vsel %vm847, %v831, 0
        %944 = vmatprep.subr.mxu0 0.0
        %945 = vmatpush1.msra.mxu0 0.0
        %946 = vmatprep.subr.mxu0 0.0
        %947 = vmatpush1.msra.mxu0 0.0
        %948 = vmatprep.subr.mxu0 0.0
        %949 = vmatpush1.msra.mxu0 0.0
        %950 = vmatprep.subr.mxu0 0.0
        %951 = vmatpush1.msra.mxu0 0.0
        %952 = vmatprep.subr.mxu0 0.0
        %953 = vmatpush1.msra.mxu0 0.0
        %954 = vmatprep.subr.mxu0 0.0
        %955 = vmatpush1.msra.mxu0 0.0
        %956 = vmatprep.subr.mxu0 0.0
        %957 = vmatpush1.msra.mxu0 0.0
        %958 = vmatprep.subr.mxu0 0.0
        %959 = vmatpush1.msra.mxu0 0.0
        %960 = vmatprep.subr.mxu0 0.0
        %961 = vmatpush1.msra.mxu0 %v839
        %962 = vmatprep.subr.mxu0 0.0
        %963 = vmatpush1.msra.mxu0 %v838
        %964 = vmatprep.subr.mxu0 0.0
        %965 = vmatpush1.msra.mxu0 %v837
        %966 = vmatprep.subr.mxu0 0.0
        %967 = vmatpush1.msra.mxu0 %v836
        %968 = vmatprep.subr.mxu0 0.0
        %969 = vmatpush1.msra.mxu0 %v835
        %970 = vmatprep.subr.mxu0 0.0
        %971 = vmatpush1.msra.mxu0 %v834
        %972 = vmatprep.subr.mxu0 0.0
        %973 = vmatpush1.msra.mxu0 %v833
        %974 = vmatprep.subr.mxu0 0.0
        %975 = vmatpush1.msra.mxu0 %v832
        %976 = vmatprep.subr.mxu0 0.0
        %977 = vmatpush2.msra.mxu0 0.0
        %978 = vmatprep.subr.mxu0 0.0
        %979 = vmatpush2.msra.mxu0 0.0
        %980 = vmatprep.subr.mxu0 0.0
        %981 = vmatpush2.msra.mxu0 0.0
        %982 = vmatprep.subr.mxu0 0.0
        %983 = vmatpush2.msra.mxu0 0.0
        %984 = vmatprep.subr.mxu0 0.0
        %985 = vmatpush2.msra.mxu0 0.0
        %986 = vmatprep.subr.mxu0 0.0
        %987 = vmatpush2.msra.mxu0 0.0
        %988 = vmatprep.subr.mxu0 0.0
        %989 = vmatpush2.msra.mxu0 0.0
        %990 = vmatprep.subr.mxu0 0.0
        %991 = vmatpush2.msra.mxu0 0.0
        %992 = vmatprep.subr.mxu0 0.0
        %993 = vmatpush2.msra.mxu0 0.0
        %994 = vmatprep.subr.mxu0 0.0
        %995 = vmatpush2.msra.mxu0 0.0
        %996 = vmatprep.subr.mxu0 0.0
        %997 = vmatpush2.msra.mxu0 0.0
        %998 = vmatprep.subr.mxu0 0.0
        %999 = vmatpush2.msra.mxu0 0.0
        %1000 = vmatprep.subr.mxu0 0.0
        %1001 = vmatpush2.msra.mxu0 0.0
        %1002 = vmatprep.subr.mxu0 0.0
        %1003 = vmatpush2.msra.mxu0 0.0
        %1004 = vmatprep.subr.mxu0 0.0
        %1005 = vmatpush2.msra.mxu0 0.0
        %1006 = vmatprep.subr.mxu0 0.0
        %1007 = vmatpush2.msra.mxu0 0.0
        %1008 = vmatprep.mubr.f32.mxu0 0.0
        %1009 = vmatmul.mubr.f32.gmra.mxu0 %v849
        %v1010 = vpop.f32.mrf.mxu0
        %v1011 = vadd.f32 %v845, %v1010
        %v1012 = vpop.f32.mrf.mxu0
        %1013 = vmatprep.mubr.f32.mxu0 0.0
        %1014 = vmatmul.mubr.f32.gmra.mxu0 %v852
        %v1015 = vpop.f32.mrf.mxu0
        %v1016 = vadd.f32 %v845, %v1015
        %v1017 = vpop.f32.mrf.mxu0
        %1018 = vmatprep.mubr.f32.mxu0 0.0
        %1019 = vmatmul.mubr.f32.gmra.mxu0 %v855
        %v1020 = vpop.f32.mrf.mxu0
        %v1021 = vadd.f32 %v845, %v1020
        %v1022 = vpop.f32.mrf.mxu0
        %1023 = vmatprep.mubr.f32.mxu0 0.0
        %1024 = vmatmul.mubr.f32.gmra.mxu0 %v858
        %v1025 = vpop.f32.mrf.mxu0
        %v1026 = vadd.f32 %v845, %v1025
        %v1027 = vpop.f32.mrf.mxu0
        %1028 = vmatprep.mubr.f32.mxu0 0.0
        %1029 = vmatmul.mubr.f32.gmra.mxu0 %v861
        %v1030 = vpop.f32.mrf.mxu0
        %v1031 = vadd.f32 %v845, %v1030
        %v1032 = vpop.f32.mrf.mxu0
        %1033 = vmatprep.mubr.f32.mxu0 0.0
        %1034 = vmatmul.mubr.f32.gmra.mxu0 %v864
        %v1035 = vpop.f32.mrf.mxu0
        %v1036 = vadd.f32 %v845, %v1035
        %v1037 = vpop.f32.mrf.mxu0
        %1038 = vmatprep.mubr.f32.mxu0 0.0
        %1039 = vmatmul.mubr.f32.gmra.mxu0 %v867
        %v1040 = vpop.f32.mrf.mxu0
        %v1041 = vadd.f32 %v845, %v1040
        %v1042 = vpop.f32.mrf.mxu0
        %1043 = vmatprep.mubr.f32.mxu0 0.0
        %1044 = vmatmul.mubr.f32.gmra.mxu0 %v870
        %v1045 = vpop.f32.mrf.mxu0
        %v1046 = vadd.f32 %v845, %v1045
        %v1047 = vpop.f32.mrf.mxu0
        %1048 = vmatprep.mubr.f32.mxu0 0.0
        %1049 = vmatmul.mubr.f32.gmra.mxu0 %v873
        %v1050 = vpop.f32.mrf.mxu0
        %v1051 = vadd.f32 %v845, %v1050
        %v1052 = vpop.f32.mrf.mxu0
        %1053 = vmatprep.mubr.f32.mxu0 0.0
        %1054 = vmatmul.mubr.f32.gmra.mxu0 %v876
        %v1055 = vpop.f32.mrf.mxu0
        %v1056 = vadd.f32 %v845, %v1055
        %v1057 = vpop.f32.mrf.mxu0
        %1058 = vmatprep.mubr.f32.mxu0 0.0
        %1059 = vmatmul.mubr.f32.gmra.mxu0 %v879
        %v1060 = vpop.f32.mrf.mxu0
        %v1061 = vadd.f32 %v845, %v1060
        %v1062 = vpop.f32.mrf.mxu0
        %1063 = vmatprep.mubr.f32.mxu0 0.0
        %1064 = vmatmul.mubr.f32.gmra.mxu0 %v882
        %v1065 = vpop.f32.mrf.mxu0
        %v1066 = vadd.f32 %v845, %v1065
        %v1067 = vpop.f32.mrf.mxu0
        %1068 = vmatprep.mubr.f32.mxu0 0.0
        %1069 = vmatmul.mubr.f32.gmra.mxu0 %v885
        %v1070 = vpop.f32.mrf.mxu0
        %v1071 = vadd.f32 %v845, %v1070
        %v1072 = vpop.f32.mrf.mxu0
        %1073 = vmatprep.mubr.f32.mxu0 0.0
        %1074 = vmatmul.mubr.f32.gmra.mxu0 %v888
        %v1075 = vpop.f32.mrf.mxu0
        %v1076 = vadd.f32 %v845, %v1075
        %v1077 = vpop.f32.mrf.mxu0
        %1078 = vmatprep.mubr.f32.mxu0 0.0
        %1079 = vmatmul.mubr.f32.gmra.mxu0 %v891
        %v1080 = vpop.f32.mrf.mxu0
        %v1081 = vadd.f32 %v845, %v1080
        %v1082 = vpop.f32.mrf.mxu0
        %1083 = vmatprep.mubr.f32.mxu0 0.0
        %1084 = vmatmul.mubr.f32.gmra.mxu0 %v894
        %v1085 = vpop.f32.mrf.mxu0
        %v1086 = vadd.f32 %v845, %v1085
        %v1087 = vpop.f32.mrf.mxu0
        %1088 = vmatprep.mubr.f32.mxu0 0.0
        %1089 = vmatmul.mubr.f32.gmra.mxu0 %v897
        %v1090 = vpop.f32.mrf.mxu0
        %v1091 = vadd.f32 %v845, %v1090
        %v1092 = vpop.f32.mrf.mxu0
        %1093 = vmatprep.mubr.f32.mxu0 0.0
        %1094 = vmatmul.mubr.f32.gmra.mxu0 %v900
        %v1095 = vpop.f32.mrf.mxu0
        %v1096 = vadd.f32 %v845, %v1095
        %v1097 = vpop.f32.mrf.mxu0
        %1098 = vmatprep.mubr.f32.mxu0 0.0
        %1099 = vmatmul.mubr.f32.gmra.mxu0 %v903
        %v1100 = vpop.f32.mrf.mxu0
        %v1101 = vadd.f32 %v845, %v1100
        %v1102 = vpop.f32.mrf.mxu0
        %1103 = vmatprep.mubr.f32.mxu0 0.0
        %1104 = vmatmul.mubr.f32.gmra.mxu0 %v906
        %v1105 = vpop.f32.mrf.mxu0
        %v1106 = vadd.f32 %v845, %v1105
        %v1107 = vpop.f32.mrf.mxu0
        %1108 = vmatprep.mubr.f32.mxu0 0.0
        %1109 = vmatmul.mubr.f32.gmra.mxu0 %v909
        %v1110 = vpop.f32.mrf.mxu0
        %v1111 = vadd.f32 %v845, %v1110
        %v1112 = vpop.f32.mrf.mxu0
        %1113 = vmatprep.mubr.f32.mxu0 0.0
        %1114 = vmatmul.mubr.f32.gmra.mxu0 %v912
        %v1115 = vpop.f32.mrf.mxu0
        %v1116 = vadd.f32 %v845, %v1115
        %v1117 = vpop.f32.mrf.mxu0
        %1118 = vmatprep.mubr.f32.mxu0 0.0
        %1119 = vmatmul.mubr.f32.gmra.mxu0 %v915
        %v1120 = vpop.f32.mrf.mxu0
        %v1121 = vadd.f32 %v845, %v1120
        %v1122 = vpop.f32.mrf.mxu0
        %1123 = vmatprep.mubr.f32.mxu0 0.0
        %1124 = vmatmul.mubr.f32.gmra.mxu0 %v918
        %v1125 = vpop.f32.mrf.mxu0
        %v1126 = vadd.f32 %v845, %v1125
        %v1127 = vpop.f32.mrf.mxu0
        %1128 = vmatprep.mubr.f32.mxu0 0.0
        %1129 = vmatmul.mubr.f32.gmra.mxu0 %v921
        %v1130 = vpop.f32.mrf.mxu0
        %v1131 = vadd.f32 %v845, %v1130
        %v1132 = vpop.f32.mrf.mxu0
        %1133 = vmatprep.mubr.f32.mxu0 0.0
        %1134 = vmatmul.mubr.f32.gmra.mxu0 %v924
        %v1135 = vpop.f32.mrf.mxu0
        %v1136 = vadd.f32 %v845, %v1135
        %v1137 = vpop.f32.mrf.mxu0
        %1138 = vmatprep.mubr.f32.mxu0 0.0
        %1139 = vmatmul.mubr.f32.gmra.mxu0 %v927
        %v1140 = vpop.f32.mrf.mxu0
        %v1141 = vadd.f32 %v845, %v1140
        %v1142 = vpop.f32.mrf.mxu0
        %1143 = vmatprep.mubr.f32.mxu0 0.0
        %1144 = vmatmul.mubr.f32.gmra.mxu0 %v930
        %v1145 = vpop.f32.mrf.mxu0
        %v1146 = vadd.f32 %v845, %v1145
        %v1147 = vpop.f32.mrf.mxu0
        %1148 = vmatprep.mubr.f32.mxu0 0.0
        %1149 = vmatmul.mubr.f32.gmra.mxu0 %v933
        %v1150 = vpop.f32.mrf.mxu0
        %v1151 = vadd.f32 %v845, %v1150
        %v1152 = vpop.f32.mrf.mxu0
        %1153 = vmatprep.mubr.f32.mxu0 0.0
        %1154 = vmatmul.mubr.f32.gmra.mxu0 %v936
        %v1155 = vpop.f32.mrf.mxu0
        %v1156 = vadd.f32 %v845, %v1155
        %v1157 = vpop.f32.mrf.mxu0
        %1158 = vmatprep.mubr.f32.mxu0 0.0
        %1159 = vmatmul.mubr.f32.gmra.mxu0 %v939
        %v1160 = vpop.f32.mrf.mxu0
        %v1161 = vadd.f32 %v845, %v1160
        %v1162 = vpop.f32.mrf.mxu0
        %1163 = vmatprep.mubr.f32.mxu0 0.0
        %1164 = vmatmul.mubr.f32.gmra.mxu0 %v942
        %v1165 = vpop.f32.mrf.mxu0
        %v1166 = vadd.f32 %v845, %v1165
        %v1167 = vpop.f32.mrf.mxu0
        %1168 = vdwg.mxu0
        %v1169 = vmax.f32 %v1011, 0.0
        %v1170 = vmax.f32 %v1016, 0.0
        %v1171 = vmax.f32 %v1021, 0.0
        %v1172 = vmax.f32 %v1026, 0.0
        %v1173 = vmax.f32 %v1031, 0.0
        %v1174 = vmax.f32 %v1036, 0.0
        %v1175 = vmax.f32 %v1041, 0.0
        %v1176 = vmax.f32 %v1046, 0.0
        %v1177 = vmax.f32 %v1051, 0.0
        %v1178 = vmax.f32 %v1056, 0.0
        %v1179 = vmax.f32 %v1061, 0.0
        %v1180 = vmax.f32 %v1066, 0.0
        %v1181 = vmax.f32 %v1071, 0.0
        %v1182 = vmax.f32 %v1076, 0.0
        %v1183 = vmax.f32 %v1081, 0.0
        %v1184 = vmax.f32 %v1086, 0.0
        %v1185 = vmax.f32 %v1091, 0.0
        %v1186 = vmax.f32 %v1096, 0.0
        %v1187 = vmax.f32 %v1101, 0.0
        %v1188 = vmax.f32 %v1106, 0.0
        %v1189 = vmax.f32 %v1111, 0.0
        %v1190 = vmax.f32 %v1116, 0.0
        %v1191 = vmax.f32 %v1121, 0.0
        %v1192 = vmax.f32 %v1126, 0.0
        %v1193 = vmax.f32 %v1131, 0.0
        %v1194 = vmax.f32 %v1136, 0.0
        %v1195 = vmax.f32 %v1141, 0.0
        %v1196 = vmax.f32 %v1146, 0.0
        %v1197 = vmax.f32 %v1151, 0.0
        %v1198 = vmax.f32 %v1156, 0.0
        %v1199 = vmax.f32 %v1161, 0.0
        %v1200 = vmax.f32 %v1166, 0.0
        %v1201 = vld [vmem:[%s6] sm:$0xff]
        %v1202 = vld [vmem:[%s6 + $0x8] sm:$0xff]
        %v1203 = vld [vmem:[%s6 + $0x10] sm:$0xff]
        %v1204 = vld [vmem:[%s6 + $0x18] sm:$0xff]
        %v1205 = vld [vmem:[%s6 + $0x20] sm:$0xff]
        %v1206 = vld [vmem:[%s6 + $0x28] sm:$0xff]
        %v1207 = vld [vmem:[%s6 + $0x30] sm:$0xff]
        %v1208 = vld [vmem:[%s6 + $0x38] sm:$0xff]
        %v1209 = vld [vmem:[#allocation2] sm:$0x1]
        %v1211 = vlaneseq
        %v1212 = vshrl.u32 %v1211, 7
        %v1213 = vsub.s32 0, %v1212
        %v1214 = vrot.slane %v1209, %v1213
        %v1217 = vsel %vm847, %v1169, 0
        %v1220 = vsel %vm847, %v1170, 0
        %v1223 = vsel %vm847, %v1171, 0
        %v1226 = vsel %vm847, %v1172, 0
        %v1229 = vsel %vm847, %v1173, 0
        %v1232 = vsel %vm847, %v1174, 0
        %v1235 = vsel %vm847, %v1175, 0
        %v1238 = vsel %vm847, %v1176, 0
        %v1241 = vsel %vm847, %v1177, 0
        %v1244 = vsel %vm847, %v1178, 0
        %v1247 = vsel %vm847, %v1179, 0
        %v1250 = vsel %vm847, %v1180, 0
        %v1253 = vsel %vm847, %v1181, 0
        %v1256 = vsel %vm847, %v1182, 0
        %v1259 = vsel %vm847, %v1183, 0
        %v1262 = vsel %vm847, %v1184, 0
        %v1265 = vsel %vm847, %v1185, 0
        %v1268 = vsel %vm847, %v1186, 0
        %v1271 = vsel %vm847, %v1187, 0
        %v1274 = vsel %vm847, %v1188, 0
        %v1277 = vsel %vm847, %v1189, 0
        %v1280 = vsel %vm847, %v1190, 0
        %v1283 = vsel %vm847, %v1191, 0
        %v1286 = vsel %vm847, %v1192, 0
        %v1289 = vsel %vm847, %v1193, 0
        %v1292 = vsel %vm847, %v1194, 0
        %v1295 = vsel %vm847, %v1195, 0
        %v1298 = vsel %vm847, %v1196, 0
        %v1301 = vsel %vm847, %v1197, 0
        %v1304 = vsel %vm847, %v1198, 0
        %v1307 = vsel %vm847, %v1199, 0
        %v1310 = vsel %vm847, %v1200, 0
        %1312 = vmatprep.subr.mxu0 0.0
        %1313 = vmatpush1.msra.mxu0 0.0
        %1314 = vmatprep.subr.mxu0 0.0
        %1315 = vmatpush1.msra.mxu0 0.0
        %1316 = vmatprep.subr.mxu0 0.0
        %1317 = vmatpush1.msra.mxu0 0.0
        %1318 = vmatprep.subr.mxu0 0.0
        %1319 = vmatpush1.msra.mxu0 0.0
        %1320 = vmatprep.subr.mxu0 0.0
        %1321 = vmatpush1.msra.mxu0 0.0
        %1322 = vmatprep.subr.mxu0 0.0
        %1323 = vmatpush1.msra.mxu0 0.0
        %1324 = vmatprep.subr.mxu0 0.0
        %1325 = vmatpush1.msra.mxu0 0.0
        %1326 = vmatprep.subr.mxu0 0.0
        %1327 = vmatpush1.msra.mxu0 0.0
        %1328 = vmatprep.subr.mxu0 0.0
        %1329 = vmatpush1.msra.mxu0 %v1208
        %1330 = vmatprep.subr.mxu0 0.0
        %1331 = vmatpush1.msra.mxu0 %v1207
        %1332 = vmatprep.subr.mxu0 0.0
        %1333 = vmatpush1.msra.mxu0 %v1206
        %1334 = vmatprep.subr.mxu0 0.0
        %1335 = vmatpush1.msra.mxu0 %v1205
        %1336 = vmatprep.subr.mxu0 0.0
        %1337 = vmatpush1.msra.mxu0 %v1204
        %1338 = vmatprep.subr.mxu0 0.0
        %1339 = vmatpush1.msra.mxu0 %v1203
        %1340 = vmatprep.subr.mxu0 0.0
        %1341 = vmatpush1.msra.mxu0 %v1202
        %1342 = vmatprep.subr.mxu0 0.0
        %1343 = vmatpush1.msra.mxu0 %v1201
        %1344 = vmatprep.subr.mxu0 0.0
        %1345 = vmatpush2.msra.mxu0 0.0
        %1346 = vmatprep.subr.mxu0 0.0
        %1347 = vmatpush2.msra.mxu0 0.0
        %1348 = vmatprep.subr.mxu0 0.0
        %1349 = vmatpush2.msra.mxu0 0.0
        %1350 = vmatprep.subr.mxu0 0.0
        %1351 = vmatpush2.msra.mxu0 0.0
        %1352 = vmatprep.subr.mxu0 0.0
        %1353 = vmatpush2.msra.mxu0 0.0
        %1354 = vmatprep.subr.mxu0 0.0
        %1355 = vmatpush2.msra.mxu0 0.0
        %1356 = vmatprep.subr.mxu0 0.0
        %1357 = vmatpush2.msra.mxu0 0.0
        %1358 = vmatprep.subr.mxu0 0.0
        %1359 = vmatpush2.msra.mxu0 0.0
        %1360 = vmatprep.subr.mxu0 0.0
        %1361 = vmatpush2.msra.mxu0 0.0
        %1362 = vmatprep.subr.mxu0 0.0
        %1363 = vmatpush2.msra.mxu0 0.0
        %1364 = vmatprep.subr.mxu0 0.0
        %1365 = vmatpush2.msra.mxu0 0.0
        %1366 = vmatprep.subr.mxu0 0.0
        %1367 = vmatpush2.msra.mxu0 0.0
        %1368 = vmatprep.subr.mxu0 0.0
        %1369 = vmatpush2.msra.mxu0 0.0
        %1370 = vmatprep.subr.mxu0 0.0
        %1371 = vmatpush2.msra.mxu0 0.0
        %1372 = vmatprep.subr.mxu0 0.0
        %1373 = vmatpush2.msra.mxu0 0.0
        %1374 = vmatprep.subr.mxu0 0.0
        %1375 = vmatpush2.msra.mxu0 0.0
        %1376 = vmatprep.mubr.f32.mxu0 0.0
        %1377 = vmatmul.mubr.f32.gmra.mxu0 %v1217
        %v1378 = vpop.f32.mrf.mxu0
        %v1379 = vadd.f32 %v1214, %v1378
        %v1380 = vpop.f32.mrf.mxu0
        %1381 = vmatprep.mubr.f32.mxu0 0.0
        %1382 = vmatmul.mubr.f32.gmra.mxu0 %v1220
        %v1383 = vpop.f32.mrf.mxu0
        %v1384 = vadd.f32 %v1214, %v1383
        %v1385 = vpop.f32.mrf.mxu0
        %1386 = vmatprep.mubr.f32.mxu0 0.0
        %1387 = vmatmul.mubr.f32.gmra.mxu0 %v1223
        %v1388 = vpop.f32.mrf.mxu0
        %v1389 = vadd.f32 %v1214, %v1388
        %v1390 = vpop.f32.mrf.mxu0
        %1391 = vmatprep.mubr.f32.mxu0 0.0
        %1392 = vmatmul.mubr.f32.gmra.mxu0 %v1226
        %v1393 = vpop.f32.mrf.mxu0
        %v1394 = vadd.f32 %v1214, %v1393
        %v1395 = vpop.f32.mrf.mxu0
        %1396 = vmatprep.mubr.f32.mxu0 0.0
        %1397 = vmatmul.mubr.f32.gmra.mxu0 %v1229
        %v1398 = vpop.f32.mrf.mxu0
        %v1399 = vadd.f32 %v1214, %v1398
        %v1400 = vpop.f32.mrf.mxu0
        %1401 = vmatprep.mubr.f32.mxu0 0.0
        %1402 = vmatmul.mubr.f32.gmra.mxu0 %v1232
        %v1403 = vpop.f32.mrf.mxu0
        %v1404 = vadd.f32 %v1214, %v1403
        %v1405 = vpop.f32.mrf.mxu0
        %1406 = vmatprep.mubr.f32.mxu0 0.0
        %1407 = vmatmul.mubr.f32.gmra.mxu0 %v1235
        %v1408 = vpop.f32.mrf.mxu0
        %v1409 = vadd.f32 %v1214, %v1408
        %v1410 = vpop.f32.mrf.mxu0
        %1411 = vmatprep.mubr.f32.mxu0 0.0
        %1412 = vmatmul.mubr.f32.gmra.mxu0 %v1238
        %v1413 = vpop.f32.mrf.mxu0
        %v1414 = vadd.f32 %v1214, %v1413
        %v1415 = vpop.f32.mrf.mxu0
        %1416 = vmatprep.mubr.f32.mxu0 0.0
        %1417 = vmatmul.mubr.f32.gmra.mxu0 %v1241
        %v1418 = vpop.f32.mrf.mxu0
        %v1419 = vadd.f32 %v1214, %v1418
        %v1420 = vpop.f32.mrf.mxu0
        %1421 = vmatprep.mubr.f32.mxu0 0.0
        %1422 = vmatmul.mubr.f32.gmra.mxu0 %v1244
        %v1423 = vpop.f32.mrf.mxu0
        %v1424 = vadd.f32 %v1214, %v1423
        %v1425 = vpop.f32.mrf.mxu0
        %1426 = vmatprep.mubr.f32.mxu0 0.0
        %1427 = vmatmul.mubr.f32.gmra.mxu0 %v1247
        %v1428 = vpop.f32.mrf.mxu0
        %v1429 = vadd.f32 %v1214, %v1428
        %v1430 = vpop.f32.mrf.mxu0
        %1431 = vmatprep.mubr.f32.mxu0 0.0
        %1432 = vmatmul.mubr.f32.gmra.mxu0 %v1250
        %v1433 = vpop.f32.mrf.mxu0
        %v1434 = vadd.f32 %v1214, %v1433
        %v1435 = vpop.f32.mrf.mxu0
        %1436 = vmatprep.mubr.f32.mxu0 0.0
        %1437 = vmatmul.mubr.f32.gmra.mxu0 %v1253
        %v1438 = vpop.f32.mrf.mxu0
        %v1439 = vadd.f32 %v1214, %v1438
        %v1440 = vpop.f32.mrf.mxu0
        %1441 = vmatprep.mubr.f32.mxu0 0.0
        %1442 = vmatmul.mubr.f32.gmra.mxu0 %v1256
        %v1443 = vpop.f32.mrf.mxu0
        %v1444 = vadd.f32 %v1214, %v1443
        %v1445 = vpop.f32.mrf.mxu0
        %1446 = vmatprep.mubr.f32.mxu0 0.0
        %1447 = vmatmul.mubr.f32.gmra.mxu0 %v1259
        %v1448 = vpop.f32.mrf.mxu0
        %v1449 = vadd.f32 %v1214, %v1448
        %v1450 = vpop.f32.mrf.mxu0
        %1451 = vmatprep.mubr.f32.mxu0 0.0
        %1452 = vmatmul.mubr.f32.gmra.mxu0 %v1262
        %v1453 = vpop.f32.mrf.mxu0
        %v1454 = vadd.f32 %v1214, %v1453
        %v1455 = vpop.f32.mrf.mxu0
        %1456 = vmatprep.mubr.f32.mxu0 0.0
        %1457 = vmatmul.mubr.f32.gmra.mxu0 %v1265
        %v1458 = vpop.f32.mrf.mxu0
        %v1459 = vadd.f32 %v1214, %v1458
        %v1460 = vpop.f32.mrf.mxu0
        %1461 = vmatprep.mubr.f32.mxu0 0.0
        %1462 = vmatmul.mubr.f32.gmra.mxu0 %v1268
        %v1463 = vpop.f32.mrf.mxu0
        %v1464 = vadd.f32 %v1214, %v1463
        %v1465 = vpop.f32.mrf.mxu0
        %1466 = vmatprep.mubr.f32.mxu0 0.0
        %1467 = vmatmul.mubr.f32.gmra.mxu0 %v1271
        %v1468 = vpop.f32.mrf.mxu0
        %v1469 = vadd.f32 %v1214, %v1468
        %v1470 = vpop.f32.mrf.mxu0
        %1471 = vmatprep.mubr.f32.mxu0 0.0
        %1472 = vmatmul.mubr.f32.gmra.mxu0 %v1274
        %v1473 = vpop.f32.mrf.mxu0
        %v1474 = vadd.f32 %v1214, %v1473
        %v1475 = vpop.f32.mrf.mxu0
        %1476 = vmatprep.mubr.f32.mxu0 0.0
        %1477 = vmatmul.mubr.f32.gmra.mxu0 %v1277
        %v1478 = vpop.f32.mrf.mxu0
        %v1479 = vadd.f32 %v1214, %v1478
        %v1480 = vpop.f32.mrf.mxu0
        %1481 = vmatprep.mubr.f32.mxu0 0.0
        %1482 = vmatmul.mubr.f32.gmra.mxu0 %v1280
        %v1483 = vpop.f32.mrf.mxu0
        %v1484 = vadd.f32 %v1214, %v1483
        %v1485 = vpop.f32.mrf.mxu0
        %1486 = vmatprep.mubr.f32.mxu0 0.0
        %1487 = vmatmul.mubr.f32.gmra.mxu0 %v1283
        %v1488 = vpop.f32.mrf.mxu0
        %v1489 = vadd.f32 %v1214, %v1488
        %v1490 = vpop.f32.mrf.mxu0
        %1491 = vmatprep.mubr.f32.mxu0 0.0
        %1492 = vmatmul.mubr.f32.gmra.mxu0 %v1286
        %v1493 = vpop.f32.mrf.mxu0
        %v1494 = vadd.f32 %v1214, %v1493
        %v1495 = vpop.f32.mrf.mxu0
        %1496 = vmatprep.mubr.f32.mxu0 0.0
        %1497 = vmatmul.mubr.f32.gmra.mxu0 %v1289
        %v1498 = vpop.f32.mrf.mxu0
        %v1499 = vadd.f32 %v1214, %v1498
        %v1500 = vpop.f32.mrf.mxu0
        %1501 = vmatprep.mubr.f32.mxu0 0.0
        %1502 = vmatmul.mubr.f32.gmra.mxu0 %v1292
        %v1503 = vpop.f32.mrf.mxu0
        %v1504 = vadd.f32 %v1214, %v1503
        %v1505 = vpop.f32.mrf.mxu0
        %1506 = vmatprep.mubr.f32.mxu0 0.0
        %1507 = vmatmul.mubr.f32.gmra.mxu0 %v1295
        %v1508 = vpop.f32.mrf.mxu0
        %v1509 = vadd.f32 %v1214, %v1508
        %v1510 = vpop.f32.mrf.mxu0
        %1511 = vmatprep.mubr.f32.mxu0 0.0
        %1512 = vmatmul.mubr.f32.gmra.mxu0 %v1298
        %v1513 = vpop.f32.mrf.mxu0
        %v1514 = vadd.f32 %v1214, %v1513
        %v1515 = vpop.f32.mrf.mxu0
        %1516 = vmatprep.mubr.f32.mxu0 0.0
        %1517 = vmatmul.mubr.f32.gmra.mxu0 %v1301
        %v1518 = vpop.f32.mrf.mxu0
        %v1519 = vadd.f32 %v1214, %v1518
        %v1520 = vpop.f32.mrf.mxu0
        %1521 = vmatprep.mubr.f32.mxu0 0.0
        %1522 = vmatmul.mubr.f32.gmra.mxu0 %v1304
        %v1523 = vpop.f32.mrf.mxu0
        %v1524 = vadd.f32 %v1214, %v1523
        %v1525 = vpop.f32.mrf.mxu0
        %1526 = vmatprep.mubr.f32.mxu0 0.0
        %1527 = vmatmul.mubr.f32.gmra.mxu0 %v1307
        %v1528 = vpop.f32.mrf.mxu0
        %v1529 = vadd.f32 %v1214, %v1528
        %v1530 = vpop.f32.mrf.mxu0
        %1531 = vmatprep.mubr.f32.mxu0 0.0
        %1532 = vmatmul.mubr.f32.gmra.mxu0 %v1310
        %v1533 = vpop.f32.mrf.mxu0
        %v1534 = vadd.f32 %v1214, %v1533
        %v1535 = vpop.f32.mrf.mxu0
        %1536 = vdwg.mxu0
        %v1537 = vxor.u32 %v1379, 2147483648
        %v1538 = vxor.u32 %v1384, 2147483648
        %v1539 = vxor.u32 %v1389, 2147483648
        %v1540 = vxor.u32 %v1394, 2147483648
        %v1541 = vxor.u32 %v1399, 2147483648
        %v1542 = vxor.u32 %v1404, 2147483648
        %v1543 = vxor.u32 %v1409, 2147483648
        %v1544 = vxor.u32 %v1414, 2147483648
        %v1545 = vxor.u32 %v1419, 2147483648
        %v1546 = vxor.u32 %v1424, 2147483648
        %v1547 = vxor.u32 %v1429, 2147483648
        %v1548 = vxor.u32 %v1434, 2147483648
        %v1549 = vxor.u32 %v1439, 2147483648
        %v1550 = vxor.u32 %v1444, 2147483648
        %v1551 = vxor.u32 %v1449, 2147483648
        %v1552 = vxor.u32 %v1454, 2147483648
        %v1553 = vxor.u32 %v1459, 2147483648
        %v1554 = vxor.u32 %v1464, 2147483648
        %v1555 = vxor.u32 %v1469, 2147483648
        %v1556 = vxor.u32 %v1474, 2147483648
        %v1557 = vxor.u32 %v1479, 2147483648
        %v1558 = vxor.u32 %v1484, 2147483648
        %v1559 = vxor.u32 %v1489, 2147483648
        %v1560 = vxor.u32 %v1494, 2147483648
        %v1561 = vxor.u32 %v1499, 2147483648
        %v1562 = vxor.u32 %v1504, 2147483648
        %v1563 = vxor.u32 %v1509, 2147483648
        %v1564 = vxor.u32 %v1514, 2147483648
        %v1565 = vxor.u32 %v1519, 2147483648
        %v1566 = vxor.u32 %v1524, 2147483648
        %v1567 = vxor.u32 %v1529, 2147483648
        %v1568 = vxor.u32 %v1534, 2147483648
        %v1569 = vmul.f32 %v1537, 1.442695
        %v1570 = vpow.pop %v1569
        %v1571 = vmul.f32 %v1538, 1.442695
        %v1572 = vpow.pop %v1571
        %v1573 = vmul.f32 %v1539, 1.442695
        %v1574 = vpow.pop %v1573
        %v1575 = vmul.f32 %v1540, 1.442695
        %v1576 = vpow.pop %v1575
        %v1577 = vmul.f32 %v1541, 1.442695
        %v1578 = vpow.pop %v1577
        %v1579 = vmul.f32 %v1542, 1.442695
        %v1580 = vpow.pop %v1579
        %v1581 = vmul.f32 %v1543, 1.442695
        %v1582 = vpow.pop %v1581
        %v1583 = vmul.f32 %v1544, 1.442695
        %v1584 = vpow.pop %v1583
        %v1585 = vmul.f32 %v1545, 1.442695
        %v1586 = vpow.pop %v1585
        %v1587 = vmul.f32 %v1546, 1.442695
        %v1588 = vpow.pop %v1587
        %v1589 = vmul.f32 %v1547, 1.442695
        %v1590 = vpow.pop %v1589
        %v1591 = vmul.f32 %v1548, 1.442695
        %v1592 = vpow.pop %v1591
        %v1593 = vmul.f32 %v1549, 1.442695
        %v1594 = vpow.pop %v1593
        %v1595 = vmul.f32 %v1550, 1.442695
        %v1596 = vpow.pop %v1595
        %v1597 = vmul.f32 %v1551, 1.442695
        %v1598 = vpow.pop %v1597
        %v1599 = vmul.f32 %v1552, 1.442695
        %v1600 = vpow.pop %v1599
        %v1601 = vmul.f32 %v1553, 1.442695
        %v1602 = vpow.pop %v1601
        %v1603 = vmul.f32 %v1554, 1.442695
        %v1604 = vpow.pop %v1603
        %v1605 = vmul.f32 %v1555, 1.442695
        %v1606 = vpow.pop %v1605
        %v1607 = vmul.f32 %v1556, 1.442695
        %v1608 = vpow.pop %v1607
        %v1609 = vmul.f32 %v1557, 1.442695
        %v1610 = vpow.pop %v1609
        %v1611 = vmul.f32 %v1558, 1.442695
        %v1612 = vpow.pop %v1611
        %v1613 = vmul.f32 %v1559, 1.442695
        %v1614 = vpow.pop %v1613
        %v1615 = vmul.f32 %v1560, 1.442695
        %v1616 = vpow.pop %v1615
        %v1617 = vmul.f32 %v1561, 1.442695
        %v1618 = vpow.pop %v1617
        %v1619 = vmul.f32 %v1562, 1.442695
        %v1620 = vpow.pop %v1619
        %v1621 = vmul.f32 %v1563, 1.442695
        %v1622 = vpow.pop %v1621
        %v1623 = vmul.f32 %v1564, 1.442695
        %v1624 = vpow.pop %v1623
        %v1625 = vmul.f32 %v1565, 1.442695
        %v1626 = vpow.pop %v1625
        %v1627 = vmul.f32 %v1566, 1.442695
        %v1628 = vpow.pop %v1627
        %v1629 = vmul.f32 %v1567, 1.442695
        %v1630 = vpow.pop %v1629
        %v1631 = vmul.f32 %v1568, 1.442695
        %v1632 = vpow.pop %v1631
        %v1633 = vadd.f32 %v1570, 1.0
        %v1634 = vadd.f32 %v1572, 1.0
        %v1635 = vadd.f32 %v1574, 1.0
        %v1636 = vadd.f32 %v1576, 1.0
        %v1637 = vadd.f32 %v1578, 1.0
        %v1638 = vadd.f32 %v1580, 1.0
        %v1639 = vadd.f32 %v1582, 1.0
        %v1640 = vadd.f32 %v1584, 1.0
        %v1641 = vadd.f32 %v1586, 1.0
        %v1642 = vadd.f32 %v1588, 1.0
        %v1643 = vadd.f32 %v1590, 1.0
        %v1644 = vadd.f32 %v1592, 1.0
        %v1645 = vadd.f32 %v1594, 1.0
        %v1646 = vadd.f32 %v1596, 1.0
        %v1647 = vadd.f32 %v1598, 1.0
        %v1648 = vadd.f32 %v1600, 1.0
        %v1649 = vadd.f32 %v1602, 1.0
        %v1650 = vadd.f32 %v1604, 1.0
        %v1651 = vadd.f32 %v1606, 1.0
        %v1652 = vadd.f32 %v1608, 1.0
        %v1653 = vadd.f32 %v1610, 1.0
        %v1654 = vadd.f32 %v1612, 1.0
        %v1655 = vadd.f32 %v1614, 1.0
        %v1656 = vadd.f32 %v1616, 1.0
        %v1657 = vadd.f32 %v1618, 1.0
        %v1658 = vadd.f32 %v1620, 1.0
        %v1659 = vadd.f32 %v1622, 1.0
        %v1660 = vadd.f32 %v1624, 1.0
        %v1661 = vadd.f32 %v1626, 1.0
        %v1662 = vadd.f32 %v1628, 1.0
        %v1663 = vadd.f32 %v1630, 1.0
        %v1664 = vadd.f32 %v1632, 1.0
        %v1665 = vrcp.pop %v1633
        %v1666 = vmul.f32 1.0, %v1665
        %v1667 = vrcp.pop %v1634
        %v1668 = vmul.f32 1.0, %v1667
        %v1669 = vrcp.pop %v1635
        %v1670 = vmul.f32 1.0, %v1669
        %v1671 = vrcp.pop %v1636
        %v1672 = vmul.f32 1.0, %v1671
        %v1673 = vrcp.pop %v1637
        %v1674 = vmul.f32 1.0, %v1673
        %v1675 = vrcp.pop %v1638
        %v1676 = vmul.f32 1.0, %v1675
        %v1677 = vrcp.pop %v1639
        %v1678 = vmul.f32 1.0, %v1677
        %v1679 = vrcp.pop %v1640
        %v1680 = vmul.f32 1.0, %v1679
        %v1681 = vrcp.pop %v1641
        %v1682 = vmul.f32 1.0, %v1681
        %v1683 = vrcp.pop %v1642
        %v1684 = vmul.f32 1.0, %v1683
        %v1685 = vrcp.pop %v1643
        %v1686 = vmul.f32 1.0, %v1685
        %v1687 = vrcp.pop %v1644
        %v1688 = vmul.f32 1.0, %v1687
        %v1689 = vrcp.pop %v1645
        %v1690 = vmul.f32 1.0, %v1689
        %v1691 = vrcp.pop %v1646
        %v1692 = vmul.f32 1.0, %v1691
        %v1693 = vrcp.pop %v1647
        %v1694 = vmul.f32 1.0, %v1693
        %v1695 = vrcp.pop %v1648
        %v1696 = vmul.f32 1.0, %v1695
        %v1697 = vrcp.pop %v1649
        %v1698 = vmul.f32 1.0, %v1697
        %v1699 = vrcp.pop %v1650
        %v1700 = vmul.f32 1.0, %v1699
        %v1701 = vrcp.pop %v1651
        %v1702 = vmul.f32 1.0, %v1701
        %v1703 = vrcp.pop %v1652
        %v1704 = vmul.f32 1.0, %v1703
        %v1705 = vrcp.pop %v1653
        %v1706 = vmul.f32 1.0, %v1705
        %v1707 = vrcp.pop %v1654
        %v1708 = vmul.f32 1.0, %v1707
        %v1709 = vrcp.pop %v1655
        %v1710 = vmul.f32 1.0, %v1709
        %v1711 = vrcp.pop %v1656
        %v1712 = vmul.f32 1.0, %v1711
        %v1713 = vrcp.pop %v1657
        %v1714 = vmul.f32 1.0, %v1713
        %v1715 = vrcp.pop %v1658
        %v1716 = vmul.f32 1.0, %v1715
        %v1717 = vrcp.pop %v1659
        %v1718 = vmul.f32 1.0, %v1717
        %v1719 = vrcp.pop %v1660
        %v1720 = vmul.f32 1.0, %v1719
        %v1721 = vrcp.pop %v1661
        %v1722 = vmul.f32 1.0, %v1721
        %v1723 = vrcp.pop %v1662
        %v1724 = vmul.f32 1.0, %v1723
        %v1725 = vrcp.pop %v1663
        %v1726 = vmul.f32 1.0, %v1725
        %v1727 = vrcp.pop %v1664
        %v1728 = vmul.f32 1.0, %v1727
        %vm1729 = vcmask 7168
        %1730 = vst.msk [vmem:[%s337] sm:$0xff] %vm1729, %v1666
        %1731 = vst.msk [vmem:[%s337 + $0x8] sm:$0xff] %vm1729, %v1668
        %1732 = vst.msk [vmem:[%s337 + $0x10] sm:$0xff] %vm1729, %v1670
        %1733 = vst.msk [vmem:[%s337 + $0x18] sm:$0xff] %vm1729, %v1672
        %1734 = vst.msk [vmem:[%s337 + $0x20] sm:$0xff] %vm1729, %v1674
        %1735 = vst.msk [vmem:[%s337 + $0x28] sm:$0xff] %vm1729, %v1676
        %1736 = vst.msk [vmem:[%s337 + $0x30] sm:$0xff] %vm1729, %v1678
        %1737 = vst.msk [vmem:[%s337 + $0x38] sm:$0xff] %vm1729, %v1680
        %1738 = vst.msk [vmem:[%s337 + $0x40] sm:$0xff] %vm1729, %v1682
        %1739 = vst.msk [vmem:[%s337 + $0x48] sm:$0xff] %vm1729, %v1684
        %1740 = vst.msk [vmem:[%s337 + $0x50] sm:$0xff] %vm1729, %v1686
        %1741 = vst.msk [vmem:[%s337 + $0x58] sm:$0xff] %vm1729, %v1688
        %1742 = vst.msk [vmem:[%s337 + $0x60] sm:$0xff] %vm1729, %v1690
        %1743 = vst.msk [vmem:[%s337 + $0x68] sm:$0xff] %vm1729, %v1692
        %1744 = vst.msk [vmem:[%s337 + $0x70] sm:$0xff] %vm1729, %v1694
        %1745 = vst.msk [vmem:[%s337 + $0x78] sm:$0xff] %vm1729, %v1696
        %1746 = vst.msk [vmem:[%s337 + $0x80] sm:$0xff] %vm1729, %v1698
        %1747 = vst.msk [vmem:[%s337 + $0x88] sm:$0xff] %vm1729, %v1700
        %1748 = vst.msk [vmem:[%s337 + $0x90] sm:$0xff] %vm1729, %v1702
        %1749 = vst.msk [vmem:[%s337 + $0x98] sm:$0xff] %vm1729, %v1704
        %1750 = vst.msk [vmem:[%s337 + $0xa0] sm:$0xff] %vm1729, %v1706
        %1751 = vst.msk [vmem:[%s337 + $0xa8] sm:$0xff] %vm1729, %v1708
        %1752 = vst.msk [vmem:[%s337 + $0xb0] sm:$0xff] %vm1729, %v1710
        %1753 = vst.msk [vmem:[%s337 + $0xb8] sm:$0xff] %vm1729, %v1712
        %1754 = vst.msk [vmem:[%s337 + $0xc0] sm:$0xff] %vm1729, %v1714
        %1755 = vst.msk [vmem:[%s337 + $0xc8] sm:$0xff] %vm1729, %v1716
        %1756 = vst.msk [vmem:[%s337 + $0xd0] sm:$0xff] %vm1729, %v1718
        %1757 = vst.msk [vmem:[%s337 + $0xd8] sm:$0xff] %vm1729, %v1720
        %1758 = vst.msk [vmem:[%s337 + $0xe0] sm:$0xff] %vm1729, %v1722
        %1759 = vst.msk [vmem:[%s337 + $0xe8] sm:$0xff] %vm1729, %v1724
        %1760 = vst.msk [vmem:[%s337 + $0xf0] sm:$0xff] %vm1729, %v1726
        %1761 = vst.msk [vmem:[%s337 + $0xf8] sm:$0xff] %vm1729, %v1728
        %s1762 = sand.u32 %s207, 1
        %s1763 = sand.u32 %s207, 1
        %s1764 = smul.addr %s1763, 256
        %s1765 = scalar_lea.vmem [#allocation3], %s1764
        // Predicated region
        $region53: #{tpu_custom_call.1} parent=51 // pred_check
          %p1766 = pneg %p217
        $region54: #{tpu_custom_call.1} parent=51 // pred_check_branch
          %1768 = sbr.rel (%p1766) target = $region56
        $region55: #{tpu_custom_call.1} parent=51 // pred_region
          %s1769 = smul.u32 32, %s21
          %s1770 = ssub.s32 125, %s1769
          %p1771 = scmp.lt.s32.totalorder %s1770, 32
          %s1772 = scalar_select %p1771, %s1770, 32
          %s1773 = smul.u32 128, %s1772
          %p1774 = scmp.ne.s32.totalorder 0, %s1773
          %s1775 = smul.addr %s1769, 8
          %s1776 = scalar_lea.vmem %s8, %s1775
          // Predicated region
          $region57: #{tpu_custom_call.1} parent=55 // pred_check
            %p1777 = pneg %p1774
          $region58: #{tpu_custom_call.1} parent=55 // pred_check_branch
            %1779 = sbr.rel (%p1777) target = $region60
          $region59: #{tpu_custom_call.1} parent=55 // pred_region
            // Predicated region
            $region61: #{tpu_custom_call.1} parent=59 // pred_check
              _
            $region62: #{tpu_custom_call.1} parent=59 // pred_check_branch
              %1781 = sbr.rel (0) target = $region64
            $region63: #{tpu_custom_call.1} parent=59 // pred_region
              // Predicated region
              $region83: #{tpu_custom_call.1} parent=63 // pred_check
                _
              $region84: #{tpu_custom_call.1} parent=63 // pred_check_branch
                %1893 = sbr.rel (0) target = $region86
              $region85: #{tpu_custom_call.1} parent=63 // pred_region
                %s1894 = sshrl.u32 %s1772, 5
                // While loop
                $region87: #{tpu_custom_call.1} parent=85 // loop_pre_header
                  _
                $region88: #{tpu_custom_call.1} parent=85 // loop_header
                  %s1896 = sphi 0, %s1898
                  %p1897 = scmp.ge.s32.totalorder %s1896, %s1894
                  %s1901 = sphi 0, %s1970
                  %s1902 = sphi %s1765, %s1973
                  %s1903 = sphi %s1776, %s1974
                $region89: #{tpu_custom_call.1} parent=85 // loop_header_branch
                  %1900 = sbr.rel (%p1897) target = $region93
                $region90: #{tpu_custom_call.1} parent=85 // loop_body
                  %v1904 = vld [vmem:[%s1902] sm:$0xff]
                  %1905 = vst [vmem:[%s1903] sm:$0xff] %v1904
                  %v1906 = vld [vmem:[%s1902 + $0x8] sm:$0xff]
                  %1907 = vst [vmem:[%s1903 + $0x8] sm:$0xff] %v1906
                  %v1908 = vld [vmem:[%s1902 + $0x10] sm:$0xff]
                  %1909 = vst [vmem:[%s1903 + $0x10] sm:$0xff] %v1908
                  %v1910 = vld [vmem:[%s1902 + $0x18] sm:$0xff]
                  %1911 = vst [vmem:[%s1903 + $0x18] sm:$0xff] %v1910
                  %v1912 = vld [vmem:[%s1902 + $0x20] sm:$0xff]
                  %1913 = vst [vmem:[%s1903 + $0x20] sm:$0xff] %v1912
                  %v1914 = vld [vmem:[%s1902 + $0x28] sm:$0xff]
                  %1915 = vst [vmem:[%s1903 + $0x28] sm:$0xff] %v1914
                  %v1916 = vld [vmem:[%s1902 + $0x30] sm:$0xff]
                  %1917 = vst [vmem:[%s1903 + $0x30] sm:$0xff] %v1916
                  %v1918 = vld [vmem:[%s1902 + $0x38] sm:$0xff]
                  %1919 = vst [vmem:[%s1903 + $0x38] sm:$0xff] %v1918
                  %v1920 = vld [vmem:[%s1902 + $0x40] sm:$0xff]
                  %1921 = vst [vmem:[%s1903 + $0x40] sm:$0xff] %v1920
                  %v1922 = vld [vmem:[%s1902 + $0x48] sm:$0xff]
                  %1923 = vst [vmem:[%s1903 + $0x48] sm:$0xff] %v1922
                  %v1924 = vld [vmem:[%s1902 + $0x50] sm:$0xff]
                  %1925 = vst [vmem:[%s1903 + $0x50] sm:$0xff] %v1924
                  %v1926 = vld [vmem:[%s1902 + $0x58] sm:$0xff]
                  %1927 = vst [vmem:[%s1903 + $0x58] sm:$0xff] %v1926
                  %v1928 = vld [vmem:[%s1902 + $0x60] sm:$0xff]
                  %1929 = vst [vmem:[%s1903 + $0x60] sm:$0xff] %v1928
                  %v1930 = vld [vmem:[%s1902 + $0x68] sm:$0xff]
                  %1931 = vst [vmem:[%s1903 + $0x68] sm:$0xff] %v1930
                  %v1932 = vld [vmem:[%s1902 + $0x70] sm:$0xff]
                  %1933 = vst [vmem:[%s1903 + $0x70] sm:$0xff] %v1932
                  %v1934 = vld [vmem:[%s1902 + $0x78] sm:$0xff]
                  %1935 = vst [vmem:[%s1903 + $0x78] sm:$0xff] %v1934
                  %v1936 = vld [vmem:[%s1902 + $0x80] sm:$0xff]
                  %1937 = vst [vmem:[%s1903 + $0x80] sm:$0xff] %v1936
                  %v1938 = vld [vmem:[%s1902 + $0x88] sm:$0xff]
                  %1939 = vst [vmem:[%s1903 + $0x88] sm:$0xff] %v1938
                  %v1940 = vld [vmem:[%s1902 + $0x90] sm:$0xff]
                  %1941 = vst [vmem:[%s1903 + $0x90] sm:$0xff] %v1940
                  %v1942 = vld [vmem:[%s1902 + $0x98] sm:$0xff]
                  %1943 = vst [vmem:[%s1903 + $0x98] sm:$0xff] %v1942
                  %v1944 = vld [vmem:[%s1902 + $0xa0] sm:$0xff]
                  %1945 = vst [vmem:[%s1903 + $0xa0] sm:$0xff] %v1944
                  %v1946 = vld [vmem:[%s1902 + $0xa8] sm:$0xff]
                  %1947 = vst [vmem:[%s1903 + $0xa8] sm:$0xff] %v1946
                  %v1948 = vld [vmem:[%s1902 + $0xb0] sm:$0xff]
                  %1949 = vst [vmem:[%s1903 + $0xb0] sm:$0xff] %v1948
                  %v1950 = vld [vmem:[%s1902 + $0xb8] sm:$0xff]
                  %1951 = vst [vmem:[%s1903 + $0xb8] sm:$0xff] %v1950
                  %v1952 = vld [vmem:[%s1902 + $0xc0] sm:$0xff]
                  %1953 = vst [vmem:[%s1903 + $0xc0] sm:$0xff] %v1952
                  %v1954 = vld [vmem:[%s1902 + $0xc8] sm:$0xff]
                  %1955 = vst [vmem:[%s1903 + $0xc8] sm:$0xff] %v1954
                  %v1956 = vld [vmem:[%s1902 + $0xd0] sm:$0xff]
                  %1957 = vst [vmem:[%s1903 + $0xd0] sm:$0xff] %v1956
                  %v1958 = vld [vmem:[%s1902 + $0xd8] sm:$0xff]
                  %1959 = vst [vmem:[%s1903 + $0xd8] sm:$0xff] %v1958
                  %v1960 = vld [vmem:[%s1902 + $0xe0] sm:$0xff]
                  %1961 = vst [vmem:[%s1903 + $0xe0] sm:$0xff] %v1960
                  %v1962 = vld [vmem:[%s1902 + $0xe8] sm:$0xff]
                  %1963 = vst [vmem:[%s1903 + $0xe8] sm:$0xff] %v1962
                  %v1964 = vld [vmem:[%s1902 + $0xf0] sm:$0xff]
                  %1965 = vst [vmem:[%s1903 + $0xf0] sm:$0xff] %v1964
                  %v1966 = vld [vmem:[%s1902 + $0xf8] sm:$0xff]
                  %1967 = vst [vmem:[%s1903 + $0xf8] sm:$0xff] %v1966
                  %s1968 = sadd.s32 1, %s1901
                  %p1969 = scmp.ge.s32.totalorder %s1968, %s1894
                  %s1970 = scalar_select %p1969, 0, %s1968
                  %s1971 = smul.u32 %s1970, 256
                  %s1972 = smul.u32 %s1970, 256
                  %s1973 = scalar_lea.vmem %s1765, %s1971 [#allocation3]
                  %s1974 = scalar_lea.vmem %s1776, %s1972
                $region91: #{tpu_custom_call.1} parent=85 // loop_footer
                  %s1898 = sadd.s32 %s1896, 1
                $region92: #{tpu_custom_call.1} parent=85 // loop_footer_branch
                  %1895 = sbr.rel target = $region88
                $region93: #{tpu_custom_call.1} parent=85 // loop_exit
                  _
                %s1975 = sshrl.u32 %s1772, 5
                %s1976 = sand.u32 %s1772, 31
                %s1977 = smul.u32 %s1975, 32
                %s1978 = smul.u32 8, %s1977
                %s1979 = scalar_lea.vmem %s1765, %s1978 [#allocation3]
                %s1980 = smul.u32 8, %s1977
                %s1981 = scalar_lea.vmem %s1776, %s1980
                // While loop
                $region94: #{tpu_custom_call.1} parent=85 // loop_pre_header
                  _
                $region95: #{tpu_custom_call.1} parent=85 // loop_header
                  %s1983 = sphi 0, %s1985
                  %p1984 = scmp.ge.s32.totalorder %s1983, %s1976
                  %s1988 = sphi 0, %s1995
                  %s1989 = sphi %s1979, %s1998
                  %s1990 = sphi %s1981, %s1999
                $region96: #{tpu_custom_call.1} parent=85 // loop_header_branch
                  %1987 = sbr.rel (%p1984) target = $region100
                $region97: #{tpu_custom_call.1} parent=85 // loop_body
                  %v1991 = vld [vmem:[%s1989] sm:$0xff]
                  %1992 = vst [vmem:[%s1990] sm:$0xff] %v1991
                  %s1993 = sadd.s32 1, %s1988
                  %p1994 = scmp.ge.s32.totalorder %s1993, %s1976
                  %s1995 = scalar_select %p1994, 0, %s1993
                  %s1996 = smul.u32 %s1995, 8
                  %s1997 = smul.u32 %s1995, 8
                  %s1998 = scalar_lea.vmem %s1979, %s1996 [#allocation3]
                  %s1999 = scalar_lea.vmem %s1981, %s1997
                $region98: #{tpu_custom_call.1} parent=85 // loop_footer
                  %s1985 = sadd.s32 %s1983, 1
                $region99: #{tpu_custom_call.1} parent=85 // loop_footer_branch
                  %1982 = sbr.rel target = $region95
                $region100: #{tpu_custom_call.1} parent=85 // loop_exit
                  _
              $region86: #{tpu_custom_call.1} parent=63 // pred_fallthru
                _
              // Predicated region
              $region101: #{tpu_custom_call.1} parent=63 // pred_check
                _
              $region102: #{tpu_custom_call.1} parent=63 // pred_check_branch
                %2001 = sbr.rel target = $region104
              $region103: #{tpu_custom_call.1} parent=63 // pred_region
                _
              $region104: #{tpu_custom_call.1} parent=63 // pred_fallthru
                _
            $region64: #{tpu_custom_call.1} parent=59 // pred_fallthru
              _
            // Predicated region
            $region65: #{tpu_custom_call.1} parent=59 // pred_check
              _
            $region66: #{tpu_custom_call.1} parent=59 // pred_check_branch
              %1783 = sbr.rel target = $region68
            $region67: #{tpu_custom_call.1} parent=59 // pred_region
              %s1785 = ssub.s32 256, 1
              %s1786 = sshrl.u32 %s1772, 5
              // While loop
              $region69: #{tpu_custom_call.1} parent=67 // loop_pre_header
                _
              $region70: #{tpu_custom_call.1} parent=67 // loop_header
                %s1788 = sphi 0, %s1790
                %p1789 = scmp.ge.s32.totalorder %s1788, %s1786
                %s1793 = sphi 0, %s1862
                %s1794 = sphi %s1765, %s1865
                %s1795 = sphi %s1776, %s1866
              $region71: #{tpu_custom_call.1} parent=67 // loop_header_branch
                %1792 = sbr.rel (%p1789) target = $region75
              $region72: #{tpu_custom_call.1} parent=67 // loop_body
                %v1796 = vld [vmem:[%s1794] sm:%s1785]
                %1797 = vst [vmem:[%s1795] sm:%s1785] %v1796
                %v1798 = vld [vmem:[%s1794 + $0x8] sm:%s1785]
                %1799 = vst [vmem:[%s1795 + $0x8] sm:%s1785] %v1798
                %v1800 = vld [vmem:[%s1794 + $0x10] sm:%s1785]
                %1801 = vst [vmem:[%s1795 + $0x10] sm:%s1785] %v1800
                %v1802 = vld [vmem:[%s1794 + $0x18] sm:%s1785]
                %1803 = vst [vmem:[%s1795 + $0x18] sm:%s1785] %v1802
                %v1804 = vld [vmem:[%s1794 + $0x20] sm:%s1785]
                %1805 = vst [vmem:[%s1795 + $0x20] sm:%s1785] %v1804
                %v1806 = vld [vmem:[%s1794 + $0x28] sm:%s1785]
                %1807 = vst [vmem:[%s1795 + $0x28] sm:%s1785] %v1806
                %v1808 = vld [vmem:[%s1794 + $0x30] sm:%s1785]
                %1809 = vst [vmem:[%s1795 + $0x30] sm:%s1785] %v1808
                %v1810 = vld [vmem:[%s1794 + $0x38] sm:%s1785]
                %1811 = vst [vmem:[%s1795 + $0x38] sm:%s1785] %v1810
                %v1812 = vld [vmem:[%s1794 + $0x40] sm:%s1785]
                %1813 = vst [vmem:[%s1795 + $0x40] sm:%s1785] %v1812
                %v1814 = vld [vmem:[%s1794 + $0x48] sm:%s1785]
                %1815 = vst [vmem:[%s1795 + $0x48] sm:%s1785] %v1814
                %v1816 = vld [vmem:[%s1794 + $0x50] sm:%s1785]
                %1817 = vst [vmem:[%s1795 + $0x50] sm:%s1785] %v1816
                %v1818 = vld [vmem:[%s1794 + $0x58] sm:%s1785]
                %1819 = vst [vmem:[%s1795 + $0x58] sm:%s1785] %v1818
                %v1820 = vld [vmem:[%s1794 + $0x60] sm:%s1785]
                %1821 = vst [vmem:[%s1795 + $0x60] sm:%s1785] %v1820
                %v1822 = vld [vmem:[%s1794 + $0x68] sm:%s1785]
                %1823 = vst [vmem:[%s1795 + $0x68] sm:%s1785] %v1822
                %v1824 = vld [vmem:[%s1794 + $0x70] sm:%s1785]
                %1825 = vst [vmem:[%s1795 + $0x70] sm:%s1785] %v1824
                %v1826 = vld [vmem:[%s1794 + $0x78] sm:%s1785]
                %1827 = vst [vmem:[%s1795 + $0x78] sm:%s1785] %v1826
                %v1828 = vld [vmem:[%s1794 + $0x80] sm:%s1785]
                %1829 = vst [vmem:[%s1795 + $0x80] sm:%s1785] %v1828
                %v1830 = vld [vmem:[%s1794 + $0x88] sm:%s1785]
                %1831 = vst [vmem:[%s1795 + $0x88] sm:%s1785] %v1830
                %v1832 = vld [vmem:[%s1794 + $0x90] sm:%s1785]
                %1833 = vst [vmem:[%s1795 + $0x90] sm:%s1785] %v1832
                %v1834 = vld [vmem:[%s1794 + $0x98] sm:%s1785]
                %1835 = vst [vmem:[%s1795 + $0x98] sm:%s1785] %v1834
                %v1836 = vld [vmem:[%s1794 + $0xa0] sm:%s1785]
                %1837 = vst [vmem:[%s1795 + $0xa0] sm:%s1785] %v1836
                %v1838 = vld [vmem:[%s1794 + $0xa8] sm:%s1785]
                %1839 = vst [vmem:[%s1795 + $0xa8] sm:%s1785] %v1838
                %v1840 = vld [vmem:[%s1794 + $0xb0] sm:%s1785]
                %1841 = vst [vmem:[%s1795 + $0xb0] sm:%s1785] %v1840
                %v1842 = vld [vmem:[%s1794 + $0xb8] sm:%s1785]
                %1843 = vst [vmem:[%s1795 + $0xb8] sm:%s1785] %v1842
                %v1844 = vld [vmem:[%s1794 + $0xc0] sm:%s1785]
                %1845 = vst [vmem:[%s1795 + $0xc0] sm:%s1785] %v1844
                %v1846 = vld [vmem:[%s1794 + $0xc8] sm:%s1785]
                %1847 = vst [vmem:[%s1795 + $0xc8] sm:%s1785] %v1846
                %v1848 = vld [vmem:[%s1794 + $0xd0] sm:%s1785]
                %1849 = vst [vmem:[%s1795 + $0xd0] sm:%s1785] %v1848
                %v1850 = vld [vmem:[%s1794 + $0xd8] sm:%s1785]
                %1851 = vst [vmem:[%s1795 + $0xd8] sm:%s1785] %v1850
                %v1852 = vld [vmem:[%s1794 + $0xe0] sm:%s1785]
                %1853 = vst [vmem:[%s1795 + $0xe0] sm:%s1785] %v1852
                %v1854 = vld [vmem:[%s1794 + $0xe8] sm:%s1785]
                %1855 = vst [vmem:[%s1795 + $0xe8] sm:%s1785] %v1854
                %v1856 = vld [vmem:[%s1794 + $0xf0] sm:%s1785]
                %1857 = vst [vmem:[%s1795 + $0xf0] sm:%s1785] %v1856
                %v1858 = vld [vmem:[%s1794 + $0xf8] sm:%s1785]
                %1859 = vst [vmem:[%s1795 + $0xf8] sm:%s1785] %v1858
                %s1860 = sadd.s32 1, %s1793
                %p1861 = scmp.ge.s32.totalorder %s1860, %s1786
                %s1862 = scalar_select %p1861, 0, %s1860
                %s1863 = smul.u32 %s1862, 256
                %s1864 = smul.u32 %s1862, 256
                %s1865 = scalar_lea.vmem %s1765, %s1863 [#allocation3]
                %s1866 = scalar_lea.vmem %s1776, %s1864
              $region73: #{tpu_custom_call.1} parent=67 // loop_footer
                %s1790 = sadd.s32 %s1788, 1
              $region74: #{tpu_custom_call.1} parent=67 // loop_footer_branch
                %1787 = sbr.rel target = $region70
              $region75: #{tpu_custom_call.1} parent=67 // loop_exit
                _
              %s1867 = sshrl.u32 %s1772, 5
              %s1868 = sand.u32 %s1772, 31
              %s1869 = smul.u32 %s1867, 32
              %s1870 = smul.u32 8, %s1869
              %s1871 = scalar_lea.vmem %s1765, %s1870 [#allocation3]
              %s1872 = smul.u32 8, %s1869
              %s1873 = scalar_lea.vmem %s1776, %s1872
              // While loop
              $region76: #{tpu_custom_call.1} parent=67 // loop_pre_header
                _
              $region77: #{tpu_custom_call.1} parent=67 // loop_header
                %s1875 = sphi 0, %s1877
                %p1876 = scmp.ge.s32.totalorder %s1875, %s1868
                %s1880 = sphi 0, %s1887
                %s1881 = sphi %s1871, %s1890
                %s1882 = sphi %s1873, %s1891
              $region78: #{tpu_custom_call.1} parent=67 // loop_header_branch
                %1879 = sbr.rel (%p1876) target = $region82
              $region79: #{tpu_custom_call.1} parent=67 // loop_body
                %v1883 = vld [vmem:[%s1881] sm:%s1785]
                %1884 = vst [vmem:[%s1882] sm:%s1785] %v1883
                %s1885 = sadd.s32 1, %s1880
                %p1886 = scmp.ge.s32.totalorder %s1885, %s1868
                %s1887 = scalar_select %p1886, 0, %s1885
                %s1888 = smul.u32 %s1887, 8
                %s1889 = smul.u32 %s1887, 8
                %s1890 = scalar_lea.vmem %s1871, %s1888 [#allocation3]
                %s1891 = scalar_lea.vmem %s1873, %s1889
              $region80: #{tpu_custom_call.1} parent=67 // loop_footer
                %s1877 = sadd.s32 %s1875, 1
              $region81: #{tpu_custom_call.1} parent=67 // loop_footer_branch
                %1874 = sbr.rel target = $region77
              $region82: #{tpu_custom_call.1} parent=67 // loop_exit
                _
            $region68: #{tpu_custom_call.1} parent=59 // pred_fallthru
              _
          $region60: #{tpu_custom_call.1} parent=55 // pred_fallthru
            _
          %2002 = vnop
        $region56: #{tpu_custom_call.1} parent=51 // pred_fallthru
          _
      $region52: #{tpu_custom_call.1} parent=5 // pred_fallthru
        _
      %p2003 = scmp.le.s32.totalorder 2, %s16
      // Predicated region
      $region105: #{tpu_custom_call.1} parent=5 // pred_check
        %p2004 = pneg %p2003
      $region106: #{tpu_custom_call.1} parent=5 // pred_check_branch
        %2006 = sbr.rel (%p2004) target = $region108
      $region107: #{tpu_custom_call.1} parent=5 // pred_region
        %s2007 = ssub.s32 %s16, 2
        // Predicated region
        $region109: #{tpu_custom_call.1} parent=107 // pred_check
          %p2008 = pneg %p223
        $region110: #{tpu_custom_call.1} parent=107 // pred_check_branch
          %2010 = sbr.rel (%p2008) target = $region112
        $region111: #{tpu_custom_call.1} parent=107 // pred_region
          %s2011 = sand.u32 %s208, 1
          %s2012 = sand.u32 %s208, 1
          %s2013 = smul.addr %s2012, 256
          %s2014 = scalar_lea.vmem [#allocation3], %s2013
        $region112: #{tpu_custom_call.1} parent=107 // pred_fallthru
          _
      $region108: #{tpu_custom_call.1} parent=5 // pred_fallthru
        _
    $region6: #{tpu_custom_call.1} parent=1 // loop_footer
      %s20 = sadd.s32 1, %s16
    $region7: #{tpu_custom_call.1} parent=1 // loop_footer_branch
      %15 = sbr.rel target = $region3
    $region8: #{tpu_custom_call.1} parent=1 // loop_exit
      _

</llo_original>
